<compile_context>
chip_gen: v6e
topology: v6e:2x2x1
jax: 0.10.0
libtpu: 0.0.40
codegen_flags: <defaults>
</compile_context>

<pallas_src>
import jax
import jax.numpy as jnp
from jax.experimental import pallas as pl
from jax.experimental.pallas import tpu as pltpu

NUM_CLASSES = 10
K_IN = 784          # 28 * 28 (kept un-padded; block last dim == full array dim)
OUT_PAD = 128       # lane-dense padded class dim


# ---------------------------------------------------------------------------
# Pallas kernel: full FCNet forward on one (TB, K_IN) bf16 batch tile.
# Weights/biases are VMEM-resident across the whole grid.
# ---------------------------------------------------------------------------
def fcnet_kernel(x_ref,
                 w1_ref, b1_ref,
                 w2_ref, b2_ref,
                 w3_ref, b3_ref,
                 w4_ref, b4_ref,
                 w5_ref, b5_ref,
                 o_ref):
    def linear(h_bf16, w_ref, b_ref):
        # bf16 x bf16 matmul on the MXU with f32 accumulation; bias add in f32.
        return jnp.dot(h_bf16, w_ref[...],
                       preferred_element_type=jnp.float32) + b_ref[...]

    def relu_bf16(z_f32):
        # ReLU in f32, then narrow to bf16 for the next MXU operand.
        return jnp.maximum(z_f32, 0.0).astype(jnp.bfloat16)

    h = x_ref[...]                                        # (TB, 784) bf16
    h = relu_bf16(linear(h, w1_ref, b1_ref))              # (TB, 512)
    h = relu_bf16(linear(h, w2_ref, b2_ref))              # (TB, 256)
    h = relu_bf16(linear(h, w3_ref, b3_ref))              # (TB, 256)
    h = relu_bf16(linear(h, w4_ref, b4_ref))              # (TB, 128)
    logits = linear(h, w5_ref, b5_ref)                    # (TB, 128) f32, padded

    # Numerically stable log_softmax over the first NUM_CLASSES lanes only.
    lane = jax.lax.broadcasted_iota(jnp.int32, logits.shape, 1)
    valid = lane < NUM_CLASSES
    masked = jnp.where(valid, logits, -jnp.inf)
    m = jnp.max(masked, axis=-1, keepdims=True)
    shifted = masked - m                                  # padded lanes: -inf
    lse = jnp.log(jnp.sum(jnp.exp(shifted), axis=-1, keepdims=True))
    # Padded lanes get 0.0 (NaN-safe) instead of -inf.
    o_ref[...] = jnp.where(valid, shifted - lse, 0.0)     # (TB, 128) lane-dense


# ---------------------------------------------------------------------------
# Batch-tile selection
#   * multiples of 16 (bf16 sublane packing)
#   * >= 2 tiles once B exceeds a modest threshold, so v7x's two TensorCores
#     each get work via dimension_semantics=("parallel",)
#   * capped at `batch_tile` rows (default 1024; comfortably within v7x's
#     32 MiB scoped / 64 MiB physical VMEM with resident weights)
# ---------------------------------------------------------------------------
def _round_up(n, m):
    return ((n + m - 1) // m) * m


def _choose_tb(B, batch_tile, split_threshold=256):
    if B <= split_threshold:
        return max(16, _round_up(B, 16))            # single small tile
    n_tiles = max(2, -(-B // batch_tile))           # >= 2 tiles for v7x
    return _round_up(-(-B // n_tiles), 16)


# ---------------------------------------------------------------------------
# Wrapper
# ---------------------------------------------------------------------------
def fcnet_forward(x_nchw, params, *, batch_tile=1024):
    """x_nchw: (B, 1, 28, 28). params: (w1,b1,...,w5,b5) in kernel layout."""
    B = x_nchw.shape[0]
    # torch.flatten(x, 1); stream as bf16 (MXU consumes bf16 anyway).
    x2 = x_nchw.reshape(B, -1).astype(jnp.bfloat16)       # (B, 784)

    tb = _choose_tb(B, batch_tile)
    b_pad = _round_up(B, tb)
    if b_pad != B:
        x2 = jnp.pad(x2, ((0, b_pad - B), (0, 0)))        # zero-pad batch rows
    grid = (b_pad // tb,)

    def resident(arr):
        # Constant index_map: block never changes -> stays VMEM-resident.
        return pl.BlockSpec(arr.shape, lambda i: (0, 0))

    (w1, b1, w2, b2, w3, b3, w4, b4, w5, b5) = params
    in_specs = [
        pl.BlockSpec((tb, K_IN), lambda i: (i, 0)),       # streamed bf16 batch tile
        resident(w1), resident(b1),
        resident(w2), resident(b2),
        resident(w3), resident(b3),
        resident(w4), resident(b4),
        resident(w5), resident(b5),
    ]
    out_spec = pl.BlockSpec((tb, OUT_PAD), lambda i: (i, 0))   # lane-dense output

    out = pl.pallas_call(
        fcnet_kernel,
        out_shape=jax.ShapeDtypeStruct((b_pad, OUT_PAD), jnp.float32),
        grid=grid,
        in_specs=in_specs,
        out_specs=out_spec,
        compiler_params=pltpu.CompilerParams(
            dimension_semantics=("parallel",)),                # v7x: 2 TCs split tiles
    )(x2, w1, b1, w2, b2, w3, b3, w4, b4, w5, b5)

    return out[:B, :NUM_CLASSES]


fcnet_forward_jit = jax.jit(fcnet_forward)


# ---------------------------------------------------------------------------
# Deterministic parameter init (PyTorch nn.Linear default: U(-1/sqrt(fan_in), ..)),
# stored in kernel layout: W as (in, out) bf16 (fc5 N-padded to 128), biases as
# (1, out) f32 (fc5 bias zero-padded to 128).
# ---------------------------------------------------------------------------
def init_params(key):
    dims = [(K_IN, 512), (512, 256), (256, 256), (256, 128), (128, NUM_CLASSES)]
    params = []
    for li, (fan_in, fan_out) in enumerate(dims):
        key, kw, kb = jax.random.split(key, 3)
        bound = 1.0 / (fan_in ** 0.5)
        w = jax.random.uniform(kw, (fan_in, fan_out), jnp.float32, -bound, bound)
        b = jax.random.uniform(kb, (1, fan_out), jnp.float32, -bound, bound)
        if li == len(dims) - 1:
            w = jnp.pad(w, ((0, 0), (0, OUT_PAD - fan_out)))    # zero N-pad
            b = jnp.pad(b, ((0, 0), (0, OUT_PAD - fan_out)))
        params += [w.astype(jnp.bfloat16), b.astype(jnp.float32)]
    return tuple(params)


# ---------------------------------------------------------------------------
# Pure-JAX reference using the same bf16-matmul / f32-accumulate recipe.
# ---------------------------------------------------------------------------
def fcnet_reference(x_nchw, params):
    (w1, b1, w2, b2, w3, b3, w4, b4, w5, b5) = params
    h = x_nchw.reshape(x_nchw.shape[0], -1).astype(jnp.float32)

    def lin(h, w, b):
        return jnp.dot(h.astype(jnp.bfloat16), w,
                       preferred_element_type=jnp.float32) + b

    h = jax.nn.relu(lin(h, w1, b1))
    h = jax.nn.relu(lin(h, w2, b2))
    h = jax.nn.relu(lin(h, w3, b3))
    h = jax.nn.relu(lin(h, w4, b4))
    logits = lin(h, w5, b5)[:, :NUM_CLASSES]
    return jax.nn.log_softmax(logits, axis=1)


if __name__ == "__main__":
    key = jax.random.PRNGKey(0)
    key, kx = jax.random.split(key)
    params = init_params(key)

    # Small MNIST-like batch: NCHW (B=8, C=1, H=28, W=28)
    x = jax.random.uniform(kx, (8, 1, 28, 28), jnp.float32, 0.0, 1.0)
    out = jax.block_until_ready(fcnet_forward_jit(x, params))
    ref = fcnet_reference(x, params)
    assert out.shape == (8, NUM_CLASSES)
    assert jnp.allclose(out, ref, atol=2e-3, rtol=2e-3), "kernel/reference mismatch"
    assert jnp.allclose(jnp.sum(jnp.exp(out), axis=1), 1.0, atol=1e-3)

    # Exercise the multi-tile, batch-padded grid path (B=300 -> 2 tiles of 160).
    key, kx2 = jax.random.split(key)
    x_big = jax.random.uniform(kx2, (300, 1, 28, 28), jnp.float32, 0.0, 1.0)
    out_big = jax.block_until_ready(fcnet_forward_jit(x_big, params))
    ref_big = fcnet_reference(x_big, params)
    assert out_big.shape == (300, NUM_CLASSES)
    assert jnp.allclose(out_big, ref_big, atol=2e-3, rtol=2e-3), "multi-tile mismatch"

    print("KERNEL_OK")
</pallas_src>

<mosaic_0001>
module attributes {stable_mosaic.version = 11 : i64} {
  func.func @fcnet_kernel(%arg0: i32, %arg1: memref<16x784xbf16, #tpu.memory_space<vmem>>, %arg2: memref<784x512xbf16, #tpu.memory_space<vmem>>, %arg3: memref<1x512xf32, #tpu.memory_space<vmem>>, %arg4: memref<512x256xbf16, #tpu.memory_space<vmem>>, %arg5: memref<1x256xf32, #tpu.memory_space<vmem>>, %arg6: memref<256x256xbf16, #tpu.memory_space<vmem>>, %arg7: memref<1x256xf32, #tpu.memory_space<vmem>>, %arg8: memref<256x128xbf16, #tpu.memory_space<vmem>>, %arg9: memref<1x128xf32, #tpu.memory_space<vmem>>, %arg10: memref<128x128xbf16, #tpu.memory_space<vmem>>, %arg11: memref<1x128xf32, #tpu.memory_space<vmem>>, %arg12: memref<16x128xf32, #tpu.memory_space<vmem>>) attributes {dimension_semantics = [#tpu.dimension_semantics<parallel>], iteration_bounds = array<i64: 1>, scalar_prefetch = 0 : i64, scratch_operands = 0 : i64, tpu.core_type = #tpu.core_type<tc>, window_params = [{transform_indices = @transform_0, window_bounds = array<i64: 16, 784>}, {pipeline_mode = #tpu.pipeline_mode<synchronous>, transform_indices = @transform_1, window_bounds = array<i64: 784, 512>}, {pipeline_mode = #tpu.pipeline_mode<synchronous>, transform_indices = @transform_2, window_bounds = array<i64: 1, 512>}, {pipeline_mode = #tpu.pipeline_mode<synchronous>, transform_indices = @transform_3, window_bounds = array<i64: 512, 256>}, {pipeline_mode = #tpu.pipeline_mode<synchronous>, transform_indices = @transform_4, window_bounds = array<i64: 1, 256>}, {pipeline_mode = #tpu.pipeline_mode<synchronous>, transform_indices = @transform_5, window_bounds = array<i64: 256, 256>}, {pipeline_mode = #tpu.pipeline_mode<synchronous>, transform_indices = @transform_6, window_bounds = array<i64: 1, 256>}, {pipeline_mode = #tpu.pipeline_mode<synchronous>, transform_indices = @transform_7, window_bounds = array<i64: 256, 128>}, {pipeline_mode = #tpu.pipeline_mode<synchronous>, transform_indices = @transform_8, window_bounds = array<i64: 1, 128>}, {pipeline_mode = #tpu.pipeline_mode<synchronous>, transform_indices = @transform_9, window_bounds = array<i64: 128, 128>}, {pipeline_mode = #tpu.pipeline_mode<synchronous>, transform_indices = @transform_10, window_bounds = array<i64: 1, 128>}, {transform_indices = @transform_11, window_bounds = array<i64: 16, 128>}]} {
    %c0 = arith.constant 0 : index
    %c0_0 = arith.constant 0 : index
    %0 = vector.load %arg1[%c0, %c0_0] : memref<16x784xbf16, #tpu.memory_space<vmem>>, vector<16x784xbf16>
    %c0_1 = arith.constant 0 : index
    %c0_2 = arith.constant 0 : index
    %1 = vector.load %arg2[%c0_1, %c0_2] : memref<784x512xbf16, #tpu.memory_space<vmem>>, vector<784x512xbf16>
    %cst = arith.constant dense<0.000000e+00> : vector<16x512xf32>
    %2 = tpu.matmul %0, %1, %cst {dimension_numbers = #tpu.dot_dimension_numbers<[1], [0], [0], [1], [0, 0, 1, 1], [], []>} : vector<16x784xbf16>, vector<784x512xbf16>, vector<16x512xf32> -> vector<16x512xf32>
    %c0_3 = arith.constant 0 : index
    %c0_4 = arith.constant 0 : index
    %3 = vector.load %arg3[%c0_3, %c0_4] : memref<1x512xf32, #tpu.memory_space<vmem>>, vector<1x512xf32>
    %4 = vector.broadcast %3 : vector<1x512xf32> to vector<16x512xf32>
    %5 = arith.addf %2, %4 : vector<16x512xf32>
    %cst_5 = arith.constant 0.000000e+00 : f32
    %6 = vector.broadcast %cst_5 : f32 to vector<16x512xf32>
    %7 = arith.maximumf %5, %6 : vector<16x512xf32>
    %8 = arith.truncf %7 : vector<16x512xf32> to vector<16x512xbf16>
    %c0_6 = arith.constant 0 : index
    %c0_7 = arith.constant 0 : index
    %9 = vector.load %arg4[%c0_6, %c0_7] : memref<512x256xbf16, #tpu.memory_space<vmem>>, vector<512x256xbf16>
    %cst_8 = arith.constant dense<0.000000e+00> : vector<16x256xf32>
    %10 = tpu.matmul %8, %9, %cst_8 {dimension_numbers = #tpu.dot_dimension_numbers<[1], [0], [0], [1], [0, 0, 1, 1], [], []>} : vector<16x512xbf16>, vector<512x256xbf16>, vector<16x256xf32> -> vector<16x256xf32>
    %c0_9 = arith.constant 0 : index
    %c0_10 = arith.constant 0 : index
    %11 = vector.load %arg5[%c0_9, %c0_10] : memref<1x256xf32, #tpu.memory_space<vmem>>, vector<1x256xf32>
    %12 = vector.broadcast %11 : vector<1x256xf32> to vector<16x256xf32>
    %13 = arith.addf %10, %12 : vector<16x256xf32>
    %cst_11 = arith.constant 0.000000e+00 : f32
    %14 = vector.broadcast %cst_11 : f32 to vector<16x256xf32>
    %15 = arith.maximumf %13, %14 : vector<16x256xf32>
    %16 = arith.truncf %15 : vector<16x256xf32> to vector<16x256xbf16>
    %c0_12 = arith.constant 0 : index
    %c0_13 = arith.constant 0 : index
    %17 = vector.load %arg6[%c0_12, %c0_13] : memref<256x256xbf16, #tpu.memory_space<vmem>>, vector<256x256xbf16>
    %cst_14 = arith.constant dense<0.000000e+00> : vector<16x256xf32>
    %18 = tpu.matmul %16, %17, %cst_14 {dimension_numbers = #tpu.dot_dimension_numbers<[1], [0], [0], [1], [0, 0, 1, 1], [], []>} : vector<16x256xbf16>, vector<256x256xbf16>, vector<16x256xf32> -> vector<16x256xf32>
    %c0_15 = arith.constant 0 : index
    %c0_16 = arith.constant 0 : index
    %19 = vector.load %arg7[%c0_15, %c0_16] : memref<1x256xf32, #tpu.memory_space<vmem>>, vector<1x256xf32>
    %20 = vector.broadcast %19 : vector<1x256xf32> to vector<16x256xf32>
    %21 = arith.addf %18, %20 : vector<16x256xf32>
    %cst_17 = arith.constant 0.000000e+00 : f32
    %22 = vector.broadcast %cst_17 : f32 to vector<16x256xf32>
    %23 = arith.maximumf %21, %22 : vector<16x256xf32>
    %24 = arith.truncf %23 : vector<16x256xf32> to vector<16x256xbf16>
    %c0_18 = arith.constant 0 : index
    %c0_19 = arith.constant 0 : index
    %25 = vector.load %arg8[%c0_18, %c0_19] : memref<256x128xbf16, #tpu.memory_space<vmem>>, vector<256x128xbf16>
    %cst_20 = arith.constant dense<0.000000e+00> : vector<16x128xf32>
    %26 = tpu.matmul %24, %25, %cst_20 {dimension_numbers = #tpu.dot_dimension_numbers<[1], [0], [0], [1], [0, 0, 1, 1], [], []>} : vector<16x256xbf16>, vector<256x128xbf16>, vector<16x128xf32> -> vector<16x128xf32>
    %c0_21 = arith.constant 0 : index
    %c0_22 = arith.constant 0 : index
    %27 = vector.load %arg9[%c0_21, %c0_22] : memref<1x128xf32, #tpu.memory_space<vmem>>, vector<1x128xf32>
    %28 = vector.broadcast %27 : vector<1x128xf32> to vector<16x128xf32>
    %29 = arith.addf %26, %28 : vector<16x128xf32>
    %cst_23 = arith.constant 0.000000e+00 : f32
    %30 = vector.broadcast %cst_23 : f32 to vector<16x128xf32>
    %31 = arith.maximumf %29, %30 : vector<16x128xf32>
    %32 = arith.truncf %31 : vector<16x128xf32> to vector<16x128xbf16>
    %c0_24 = arith.constant 0 : index
    %c0_25 = arith.constant 0 : index
    %33 = vector.load %arg10[%c0_24, %c0_25] : memref<128x128xbf16, #tpu.memory_space<vmem>>, vector<128x128xbf16>
    %cst_26 = arith.constant dense<0.000000e+00> : vector<16x128xf32>
    %34 = tpu.matmul %32, %33, %cst_26 {dimension_numbers = #tpu.dot_dimension_numbers<[1], [0], [0], [1], [0, 0, 1, 1], [], []>} : vector<16x128xbf16>, vector<128x128xbf16>, vector<16x128xf32> -> vector<16x128xf32>
    %c0_27 = arith.constant 0 : index
    %c0_28 = arith.constant 0 : index
    %35 = vector.load %arg11[%c0_27, %c0_28] : memref<1x128xf32, #tpu.memory_space<vmem>>, vector<1x128xf32>
    %36 = vector.broadcast %35 : vector<1x128xf32> to vector<16x128xf32>
    %37 = arith.addf %34, %36 : vector<16x128xf32>
    %38 = tpu.iota {dimensions = array<i32: 1>} : vector<16x128xi32>
    %c10_i32 = arith.constant 10 : i32
    %39 = vector.broadcast %c10_i32 : i32 to vector<16x128xi32>
    %40 = arith.cmpi slt, %38, %39 : vector<16x128xi32>
    %cst_29 = arith.constant 0xFF800000 : f32
    %41 = vector.broadcast %cst_29 : f32 to vector<16x128xf32>
    %42 = arith.select %40, %37, %41 : vector<16x128xi1>, vector<16x128xf32>
    %cst_30 = arith.constant dense<0xFF800000> : vector<16xf32>
    %43 = vector.multi_reduction <maximumf>, %42, %cst_30 [1] : vector<16x128xf32> to vector<16xf32>
    %44 = vector.shape_cast %43 : vector<16xf32> to vector<16x1xf32>
    %45 = vector.broadcast %44 : vector<16x1xf32> to vector<16x128xf32>
    %46 = arith.subf %42, %45 : vector<16x128xf32>
    %47 = math.exp %46 : vector<16x128xf32>
    %cst_31 = arith.constant dense<0.000000e+00> : vector<16xf32>
    %48 = vector.multi_reduction <add>, %47, %cst_31 [1] : vector<16x128xf32> to vector<16xf32>
    %49 = vector.shape_cast %48 : vector<16xf32> to vector<16x1xf32>
    %50 = math.log %49 : vector<16x1xf32>
    %51 = vector.broadcast %50 : vector<16x1xf32> to vector<16x128xf32>
    %52 = arith.subf %46, %51 : vector<16x128xf32>
    %cst_32 = arith.constant 0.000000e+00 : f32
    %53 = vector.broadcast %cst_32 : f32 to vector<16x128xf32>
    %54 = arith.select %40, %52, %53 : vector<16x128xi1>, vector<16x128xf32>
    %c0_33 = arith.constant 0 : index
    %c0_34 = arith.constant 0 : index
    %55 = vector.load %arg12[%c0_33, %c0_34] : memref<16x128xf32, #tpu.memory_space<vmem>>, vector<16x128xf32>
    tpu.vector_store %arg12[%c0_33, %c0_34], %54 {strides = array<i32>} : memref<16x128xf32, #tpu.memory_space<vmem>>, vector<16x128xf32>,
    return
  }
  func.func @transform_0(%arg0: i32) -> (i32, i32) {
    %c0_i32 = arith.constant 0 : i32
    %c0_i32_0 = arith.constant 0 : i32
    return %arg0, %c0_i32 : i32, i32
  }
  func.func @transform_1(%arg0: i32) -> (i32, i32) {
    %c0_i32 = arith.constant 0 : i32
    %c0_i32_0 = arith.constant 0 : i32
    %c0_i32_1 = arith.constant 0 : i32
    return %c0_i32, %c0_i32_0 : i32, i32
  }
  func.func @transform_2(%arg0: i32) -> (i32, i32) {
    %c0_i32 = arith.constant 0 : i32
    %c0_i32_0 = arith.constant 0 : i32
    %c0_i32_1 = arith.constant 0 : i32
    return %c0_i32, %c0_i32_0 : i32, i32
  }
  func.func @transform_3(%arg0: i32) -> (i32, i32) {
    %c0_i32 = arith.constant 0 : i32
    %c0_i32_0 = arith.constant 0 : i32
    %c0_i32_1 = arith.constant 0 : i32
    return %c0_i32, %c0_i32_0 : i32, i32
  }
  func.func @transform_4(%arg0: i32) -> (i32, i32) {
    %c0_i32 = arith.constant 0 : i32
    %c0_i32_0 = arith.constant 0 : i32
    %c0_i32_1 = arith.constant 0 : i32
    return %c0_i32, %c0_i32_0 : i32, i32
  }
  func.func @transform_5(%arg0: i32) -> (i32, i32) {
    %c0_i32 = arith.constant 0 : i32
    %c0_i32_0 = arith.constant 0 : i32
    %c0_i32_1 = arith.constant 0 : i32
    return %c0_i32, %c0_i32_0 : i32, i32
  }
  func.func @transform_6(%arg0: i32) -> (i32, i32) {
    %c0_i32 = arith.constant 0 : i32
    %c0_i32_0 = arith.constant 0 : i32
    %c0_i32_1 = arith.constant 0 : i32
    return %c0_i32, %c0_i32_0 : i32, i32
  }
  func.func @transform_7(%arg0: i32) -> (i32, i32) {
    %c0_i32 = arith.constant 0 : i32
    %c0_i32_0 = arith.constant 0 : i32
    %c0_i32_1 = arith.constant 0 : i32
    return %c0_i32, %c0_i32_0 : i32, i32
  }
  func.func @transform_8(%arg0: i32) -> (i32, i32) {
    %c0_i32 = arith.constant 0 : i32
    %c0_i32_0 = arith.constant 0 : i32
    %c0_i32_1 = arith.constant 0 : i32
    return %c0_i32, %c0_i32_0 : i32, i32
  }
  func.func @transform_9(%arg0: i32) -> (i32, i32) {
    %c0_i32 = arith.constant 0 : i32
    %c0_i32_0 = arith.constant 0 : i32
    %c0_i32_1 = arith.constant 0 : i32
    return %c0_i32, %c0_i32_0 : i32, i32
  }
  func.func @transform_10(%arg0: i32) -> (i32, i32) {
    %c0_i32 = arith.constant 0 : i32
    %c0_i32_0 = arith.constant 0 : i32
    %c0_i32_1 = arith.constant 0 : i32
    return %c0_i32, %c0_i32_0 : i32, i32
  }
  func.func @transform_11(%arg0: i32) -> (i32, i32) {
    %c0_i32 = arith.constant 0 : i32
    %c0_i32_0 = arith.constant 0 : i32
    return %arg0, %c0_i32 : i32, i32
  }
}

</mosaic_0001>

<llo_original>
// kernel: fcnet_forward.1
$region0: #{fcnet_forward.1}
  #allocation0 [shape = 'u32[]', space=smem, size = 0x4, offset = 0x4, fixed_abs, tag = 'smem constant byte address 0x4 - core index']
  #allocation1 [shape = 'u32[144,128]{1,0:T(1,128)}', space=vmem, size = 0x12000, scoped, tag = 'internal scratch']
  %s0 = inlined_call_operand.vmem [shape: bf16[16,784], index: 0, kind: input, shape index: {}]
  %s1 = inlined_call_operand.hbm [shape: bf16[784,512], index: 1, kind: input, shape index: {}]
  %s2 = inlined_call_operand.vmem [shape: f32[1,512], index: 2, kind: input, shape index: {}]
  %s3 = inlined_call_operand.vmem [shape: bf16[512,256], index: 3, kind: input, shape index: {}]
  %s4 = inlined_call_operand.vmem [shape: f32[1,256], index: 4, kind: input, shape index: {}]
  %s5 = inlined_call_operand.hbm [shape: bf16[256,256], index: 5, kind: input, shape index: {}]
  %s6 = inlined_call_operand.vmem [shape: f32[1,256], index: 6, kind: input, shape index: {}]
  %s7 = inlined_call_operand.hbm [shape: bf16[256,128], index: 7, kind: input, shape index: {}]
  %s8 = inlined_call_operand.vmem [shape: f32[1,128], index: 8, kind: input, shape index: {}]
  %s9 = inlined_call_operand.vmem [shape: bf16[128,128], index: 9, kind: input, shape index: {}]
  %s10 = inlined_call_operand.vmem [shape: f32[1,128], index: 10, kind: input, shape index: {}]
  %s11 = inlined_call_operand.vmem [shape: f32[16,128], index: 11, kind: output, shape index: {}]
  %s12 = sld [smem:[#allocation0]]
  $region66: #{fcnet_forward.1} parent=0
    _
  %s14 = ssub.s32 1, %s12
  %s15 = scalar_select 0, %s14, %s12
  $region1: #{fcnet_forward.1} parent=0
    #allocation2 [shape = 'u8[802816]{0}', space=vmem, size = 0xc4000, scoped, tag = 'input window, operand 1, single buffered']
    #allocation3 [shape = 's32[1]{0}', space=sflag, size = 0x4, scoped, tag = 'scoped memory for fcnet_forward.1']
    #allocation4 [shape = 'u8[131072]{0}', space=vmem, size = 0x20000, scoped, tag = 'input window, operand 5, single buffered']
    #allocation5 [shape = 's32[1]{0}', space=sflag, size = 0x4, scoped, tag = 'scoped memory for fcnet_forward.1']
    #allocation6 [shape = 'u8[65536]{0}', space=vmem, size = 0x10000, scoped, tag = 'input window, operand 7, single buffered']
    %16 = vsyncpa [#allocation3], 0
    %17 = vsyncpa [#allocation5], 0
    // Predicated region
    $region2: #{fcnet_forward.1} parent=1 // pred_check
      _
    $region3: #{fcnet_forward.1} parent=1 // pred_check_branch
      %19 = sbr.rel (0) target = $region5
    $region4: #{fcnet_forward.1} parent=1 // pred_region
      _
    $region5: #{fcnet_forward.1} parent=1 // pred_fallthru
      _
    // Predicated region
    $region6: #{fcnet_forward.1} parent=1 // pred_check
      _
    $region7: #{fcnet_forward.1} parent=1 // pred_check_branch
      %21 = sbr.rel (0) target = $region9
    $region8: #{fcnet_forward.1} parent=1 // pred_region
      %s23 = ssub.s32 25088, 25088
      %24 = vsyncadd [#allocation3], %s23
      %s25 = sshll.u32 [#allocation2], 4
      %s26 = int_to_ptr.vmem [resolvable:$true] %s25
      %31 = dma.hbm_to_vmem [thread:$0]  %s1, 25088, %s26, [#allocation3], 256, 256, 16
    $region9: #{fcnet_forward.1} parent=1 // pred_fallthru
      _
    // Predicated region
    $region10: #{fcnet_forward.1} parent=1 // pred_check
      _
    $region11: #{fcnet_forward.1} parent=1 // pred_check_branch
      %33 = sbr.rel (0) target = $region13
    $region12: #{fcnet_forward.1} parent=1 // pred_region
      _
    $region13: #{fcnet_forward.1} parent=1 // pred_fallthru
      _
    // Predicated region
    $region14: #{fcnet_forward.1} parent=1 // pred_check
      _
    $region15: #{fcnet_forward.1} parent=1 // pred_check_branch
      %35 = sbr.rel (0) target = $region17
    $region16: #{fcnet_forward.1} parent=1 // pred_region
      _
    $region17: #{fcnet_forward.1} parent=1 // pred_fallthru
      _
    // Predicated region
    $region18: #{fcnet_forward.1} parent=1 // pred_check
      _
    $region19: #{fcnet_forward.1} parent=1 // pred_check_branch
      %37 = sbr.rel (0) target = $region21
    $region20: #{fcnet_forward.1} parent=1 // pred_region
      _
    $region21: #{fcnet_forward.1} parent=1 // pred_fallthru
      _
    // Predicated region
    $region22: #{fcnet_forward.1} parent=1 // pred_check
      _
    $region23: #{fcnet_forward.1} parent=1 // pred_check_branch
      %39 = sbr.rel (0) target = $region25
    $region24: #{fcnet_forward.1} parent=1 // pred_region
      %s41 = ssub.s32 4096, 4096
      %42 = vsyncadd [#allocation5], %s41
      %s43 = sshll.u32 [#allocation4], 4
      %s44 = int_to_ptr.vmem [resolvable:$true] %s43
      %49 = dma.hbm_to_vmem [thread:$0]  %s5, 4096, %s44, [#allocation5], 128, 128, 8
    $region25: #{fcnet_forward.1} parent=1 // pred_fallthru
      _
    // Predicated region
    $region26: #{fcnet_forward.1} parent=1 // pred_check
      _
    $region27: #{fcnet_forward.1} parent=1 // pred_check_branch
      %51 = sbr.rel (0) target = $region29
    $region28: #{fcnet_forward.1} parent=1 // pred_region
      _
    $region29: #{fcnet_forward.1} parent=1 // pred_fallthru
      _
    // Predicated region
    $region30: #{fcnet_forward.1} parent=1 // pred_check
      _
    $region31: #{fcnet_forward.1} parent=1 // pred_check_branch
      %53 = sbr.rel (0) target = $region33
    $region32: #{fcnet_forward.1} parent=1 // pred_region
      %s55 = ssub.s32 2048, 2048
      %56 = vsyncadd [#allocation5], %s55
      %s57 = sshll.u32 [#allocation6], 4
      %s58 = int_to_ptr.vmem [resolvable:$true] %s57
      %63 = dma.hbm_to_vmem [thread:$0]  %s7, 2048, %s58, [#allocation5], 64, 64, 4
    $region33: #{fcnet_forward.1} parent=1 // pred_fallthru
      _
    // Predicated region
    $region34: #{fcnet_forward.1} parent=1 // pred_check
      _
    $region35: #{fcnet_forward.1} parent=1 // pred_check_branch
      %65 = sbr.rel (0) target = $region37
    $region36: #{fcnet_forward.1} parent=1 // pred_region
      _
    $region37: #{fcnet_forward.1} parent=1 // pred_fallthru
      _
    // Predicated region
    $region38: #{fcnet_forward.1} parent=1 // pred_check
      _
    $region39: #{fcnet_forward.1} parent=1 // pred_check_branch
      %67 = sbr.rel (0) target = $region41
    $region40: #{fcnet_forward.1} parent=1 // pred_region
      _
    $region41: #{fcnet_forward.1} parent=1 // pred_fallthru
      _
    // Predicated region
    $region42: #{fcnet_forward.1} parent=1 // pred_check
      _
    $region43: #{fcnet_forward.1} parent=1 // pred_check_branch
      %69 = sbr.rel (0) target = $region45
    $region44: #{fcnet_forward.1} parent=1 // pred_region
      _
    $region45: #{fcnet_forward.1} parent=1 // pred_fallthru
      _
    // Predicated region
    $region46: #{fcnet_forward.1} parent=1 // pred_check
      _
    $region47: #{fcnet_forward.1} parent=1 // pred_check_branch
      %71 = sbr.rel (0) target = $region49
    $region48: #{fcnet_forward.1} parent=1 // pred_region
      %72 = dma.done [#allocation3], 25088
    $region49: #{fcnet_forward.1} parent=1 // pred_fallthru
      _
    // Predicated region
    $region50: #{fcnet_forward.1} parent=1 // pred_check
      _
    $region51: #{fcnet_forward.1} parent=1 // pred_check_branch
      %74 = sbr.rel (0) target = $region53
    $region52: #{fcnet_forward.1} parent=1 // pred_region
      %75 = dma.done [#allocation5], 4096
    $region53: #{fcnet_forward.1} parent=1 // pred_fallthru
      _
    // Predicated region
    $region54: #{fcnet_forward.1} parent=1 // pred_check
      _
    $region55: #{fcnet_forward.1} parent=1 // pred_check_branch
      %77 = sbr.rel (0) target = $region57
    $region56: #{fcnet_forward.1} parent=1 // pred_region
      %78 = dma.done [#allocation5], 2048
    $region57: #{fcnet_forward.1} parent=1 // pred_fallthru
      _
    %v80 = vld [vmem:[%s0] sm:$0xff]
    %v81 = vld [vmem:[%s0 + $0x8] sm:$0xff]
    %v82 = vld [vmem:[%s0 + $0x10] sm:$0xff]
    %v83 = vld [vmem:[%s0 + $0x18] sm:$0xf]
    %v84 = vld [vmem:[%s0 + $0x1c] sm:$0xff]
    %v85 = vld [vmem:[%s0 + $0x24] sm:$0xff]
    %v86 = vld [vmem:[%s0 + $0x2c] sm:$0xff]
    %v87 = vld [vmem:[%s0 + $0x34] sm:$0xf]
    %v88 = vld [vmem:[#allocation2] sm:$0xff]
    %v89 = vld [vmem:[#allocation2 + $0x8] sm:$0xff]
    %v90 = vld [vmem:[#allocation2 + $0x10] sm:$0xff]
    %v91 = vld [vmem:[#allocation2 + $0x18] sm:$0xff]
    %v92 = vld [vmem:[#allocation2 + $0x20] sm:$0xff]
    %v93 = vld [vmem:[#allocation2 + $0x28] sm:$0xff]
    %v94 = vld [vmem:[#allocation2 + $0x30] sm:$0xff]
    %v95 = vld [vmem:[#allocation2 + $0x38] sm:$0xff]
    %v96 = vld [vmem:[#allocation2 + $0x40] sm:$0xff]
    %v97 = vld [vmem:[#allocation2 + $0x48] sm:$0xff]
    %v98 = vld [vmem:[#allocation2 + $0x50] sm:$0xff]
    %v99 = vld [vmem:[#allocation2 + $0x58] sm:$0xff]
    %v100 = vld [vmem:[#allocation2 + $0x60] sm:$0xff]
    %v101 = vld [vmem:[#allocation2 + $0x68] sm:$0xff]
    %v102 = vld [vmem:[#allocation2 + $0x70] sm:$0xff]
    %v103 = vld [vmem:[#allocation2 + $0x78] sm:$0xff]
    %v104 = vld [vmem:[#allocation2 + $0x80] sm:$0xff]
    %v105 = vld [vmem:[#allocation2 + $0x88] sm:$0xff]
    %v106 = vld [vmem:[#allocation2 + $0x90] sm:$0xff]
    %v107 = vld [vmem:[#allocation2 + $0x98] sm:$0xff]
    %v108 = vld [vmem:[#allocation2 + $0xa0] sm:$0xff]
    %v109 = vld [vmem:[#allocation2 + $0xa8] sm:$0xff]
    %v110 = vld [vmem:[#allocation2 + $0xb0] sm:$0xff]
    %v111 = vld [vmem:[#allocation2 + $0xb8] sm:$0xff]
    %v112 = vld [vmem:[#allocation2 + $0xc0] sm:$0xff]
    %v113 = vld [vmem:[#allocation2 + $0xc8] sm:$0xff]
    %v114 = vld [vmem:[#allocation2 + $0xd0] sm:$0xff]
    %v115 = vld [vmem:[#allocation2 + $0xd8] sm:$0xff]
    %v116 = vld [vmem:[#allocation2 + $0xe0] sm:$0xff]
    %v117 = vld [vmem:[#allocation2 + $0xe8] sm:$0xff]
    %v118 = vld [vmem:[#allocation2 + $0xf0] sm:$0xff]
    %v119 = vld [vmem:[#allocation2 + $0xf8] sm:$0xff]
    %v120 = vld [vmem:[#allocation2 + $0x100] sm:$0xff]
    %v121 = vld [vmem:[#allocation2 + $0x108] sm:$0xff]
    %v122 = vld [vmem:[#allocation2 + $0x110] sm:$0xff]
    %v123 = vld [vmem:[#allocation2 + $0x118] sm:$0xff]
    %v124 = vld [vmem:[#allocation2 + $0x120] sm:$0xff]
    %v125 = vld [vmem:[#allocation2 + $0x128] sm:$0xff]
    %v126 = vld [vmem:[#allocation2 + $0x130] sm:$0xff]
    %v127 = vld [vmem:[#allocation2 + $0x138] sm:$0xff]
    %v128 = vld [vmem:[#allocation2 + $0x140] sm:$0xff]
    %v129 = vld [vmem:[#allocation2 + $0x148] sm:$0xff]
    %v130 = vld [vmem:[#allocation2 + $0x150] sm:$0xff]
    %v131 = vld [vmem:[#allocation2 + $0x158] sm:$0xff]
    %v132 = vld [vmem:[#allocation2 + $0x160] sm:$0xff]
    %v133 = vld [vmem:[#allocation2 + $0x168] sm:$0xff]
    %v134 = vld [vmem:[#allocation2 + $0x170] sm:$0xff]
    %v135 = vld [vmem:[#allocation2 + $0x178] sm:$0xff]
    %v136 = vld [vmem:[#allocation2 + $0x180] sm:$0xff]
    %v137 = vld [vmem:[#allocation2 + $0x188] sm:$0xff]
    %v138 = vld [vmem:[#allocation2 + $0x190] sm:$0xff]
    %v139 = vld [vmem:[#allocation2 + $0x198] sm:$0xff]
    %v140 = vld [vmem:[#allocation2 + $0x1a0] sm:$0xff]
    %v141 = vld [vmem:[#allocation2 + $0x1a8] sm:$0xff]
    %v142 = vld [vmem:[#allocation2 + $0x1b0] sm:$0xff]
    %v143 = vld [vmem:[#allocation2 + $0x1b8] sm:$0xff]
    %v144 = vld [vmem:[#allocation2 + $0x1c0] sm:$0xff]
    %v145 = vld [vmem:[#allocation2 + $0x1c8] sm:$0xff]
    %v146 = vld [vmem:[#allocation2 + $0x1d0] sm:$0xff]
    %v147 = vld [vmem:[#allocation2 + $0x1d8] sm:$0xff]
    %v148 = vld [vmem:[#allocation2 + $0x1e0] sm:$0xff]
    %v149 = vld [vmem:[#allocation2 + $0x1e8] sm:$0xff]
    %v150 = vld [vmem:[#allocation2 + $0x1f0] sm:$0xff]
    %v151 = vld [vmem:[#allocation2 + $0x1f8] sm:$0xff]
    %v152 = vld [vmem:[#allocation2 + $0x200] sm:$0xff]
    %v153 = vld [vmem:[#allocation2 + $0x208] sm:$0xff]
    %v154 = vld [vmem:[#allocation2 + $0x210] sm:$0xff]
    %v155 = vld [vmem:[#allocation2 + $0x218] sm:$0xff]
    %v156 = vld [vmem:[#allocation2 + $0x220] sm:$0xff]
    %v157 = vld [vmem:[#allocation2 + $0x228] sm:$0xff]
    %v158 = vld [vmem:[#allocation2 + $0x230] sm:$0xff]
    %v159 = vld [vmem:[#allocation2 + $0x238] sm:$0xff]
    %v160 = vld [vmem:[#allocation2 + $0x240] sm:$0xff]
    %v161 = vld [vmem:[#allocation2 + $0x248] sm:$0xff]
    %v162 = vld [vmem:[#allocation2 + $0x250] sm:$0xff]
    %v163 = vld [vmem:[#allocation2 + $0x258] sm:$0xff]
    %v164 = vld [vmem:[#allocation2 + $0x260] sm:$0xff]
    %v165 = vld [vmem:[#allocation2 + $0x268] sm:$0xff]
    %v166 = vld [vmem:[#allocation2 + $0x270] sm:$0xff]
    %v167 = vld [vmem:[#allocation2 + $0x278] sm:$0xff]
    %v168 = vld [vmem:[#allocation2 + $0x280] sm:$0xff]
    %v169 = vld [vmem:[#allocation2 + $0x288] sm:$0xff]
    %v170 = vld [vmem:[#allocation2 + $0x290] sm:$0xff]
    %v171 = vld [vmem:[#allocation2 + $0x298] sm:$0xff]
    %v172 = vld [vmem:[#allocation2 + $0x2a0] sm:$0xff]
    %v173 = vld [vmem:[#allocation2 + $0x2a8] sm:$0xff]
    %v174 = vld [vmem:[#allocation2 + $0x2b0] sm:$0xff]
    %v175 = vld [vmem:[#allocation2 + $0x2b8] sm:$0xff]
    %v176 = vld [vmem:[#allocation2 + $0x2c0] sm:$0xff]
    %v177 = vld [vmem:[#allocation2 + $0x2c8] sm:$0xff]
    %v178 = vld [vmem:[#allocation2 + $0x2d0] sm:$0xff]
    %v179 = vld [vmem:[#allocation2 + $0x2d8] sm:$0xff]
    %v180 = vld [vmem:[#allocation2 + $0x2e0] sm:$0xff]
    %v181 = vld [vmem:[#allocation2 + $0x2e8] sm:$0xff]
    %v182 = vld [vmem:[#allocation2 + $0x2f0] sm:$0xff]
    %v183 = vld [vmem:[#allocation2 + $0x2f8] sm:$0xff]
    %v184 = vld [vmem:[#allocation2 + $0x300] sm:$0xff]
    %v185 = vld [vmem:[#allocation2 + $0x308] sm:$0xff]
    %v186 = vld [vmem:[#allocation2 + $0x310] sm:$0xff]
    %v187 = vld [vmem:[#allocation2 + $0x318] sm:$0xff]
    %v188 = vld [vmem:[#allocation2 + $0x320] sm:$0xff]
    %v189 = vld [vmem:[#allocation2 + $0x328] sm:$0xff]
    %v190 = vld [vmem:[#allocation2 + $0x330] sm:$0xff]
    %v191 = vld [vmem:[#allocation2 + $0x338] sm:$0xff]
    %v192 = vld [vmem:[#allocation2 + $0x340] sm:$0xff]
    %v193 = vld [vmem:[#allocation2 + $0x348] sm:$0xff]
    %v194 = vld [vmem:[#allocation2 + $0x350] sm:$0xff]
    %v195 = vld [vmem:[#allocation2 + $0x358] sm:$0xff]
    %v196 = vld [vmem:[#allocation2 + $0x360] sm:$0xff]
    %v197 = vld [vmem:[#allocation2 + $0x368] sm:$0xff]
    %v198 = vld [vmem:[#allocation2 + $0x370] sm:$0xff]
    %v199 = vld [vmem:[#allocation2 + $0x378] sm:$0xff]
    %v200 = vld [vmem:[#allocation2 + $0x380] sm:$0xff]
    %v201 = vld [vmem:[#allocation2 + $0x388] sm:$0xff]
    %v202 = vld [vmem:[#allocation2 + $0x390] sm:$0xff]
    %v203 = vld [vmem:[#allocation2 + $0x398] sm:$0xff]
    %v204 = vld [vmem:[#allocation2 + $0x3a0] sm:$0xff]
    %v205 = vld [vmem:[#allocation2 + $0x3a8] sm:$0xff]
    %v206 = vld [vmem:[#allocation2 + $0x3b0] sm:$0xff]
    %v207 = vld [vmem:[#allocation2 + $0x3b8] sm:$0xff]
    %v208 = vld [vmem:[#allocation2 + $0x3c0] sm:$0xff]
    %v209 = vld [vmem:[#allocation2 + $0x3c8] sm:$0xff]
    %v210 = vld [vmem:[#allocation2 + $0x3d0] sm:$0xff]
    %v211 = vld [vmem:[#allocation2 + $0x3d8] sm:$0xff]
    %v212 = vld [vmem:[#allocation2 + $0x3e0] sm:$0xff]
    %v213 = vld [vmem:[#allocation2 + $0x3e8] sm:$0xff]
    %v214 = vld [vmem:[#allocation2 + $0x3f0] sm:$0xff]
    %v215 = vld [vmem:[#allocation2 + $0x3f8] sm:$0xff]
    %v216 = vld [vmem:[#allocation2 + $0x400] sm:$0xff]
    %v217 = vld [vmem:[#allocation2 + $0x408] sm:$0xff]
    %v218 = vld [vmem:[#allocation2 + $0x410] sm:$0xff]
    %v219 = vld [vmem:[#allocation2 + $0x418] sm:$0xff]
    %v220 = vld [vmem:[#allocation2 + $0x420] sm:$0xff]
    %v221 = vld [vmem:[#allocation2 + $0x428] sm:$0xff]
    %v222 = vld [vmem:[#allocation2 + $0x430] sm:$0xff]
    %v223 = vld [vmem:[#allocation2 + $0x438] sm:$0xff]
    %v224 = vld [vmem:[#allocation2 + $0x440] sm:$0xff]
    %v225 = vld [vmem:[#allocation2 + $0x448] sm:$0xff]
    %v226 = vld [vmem:[#allocation2 + $0x450] sm:$0xff]
    %v227 = vld [vmem:[#allocation2 + $0x458] sm:$0xff]
    %v228 = vld [vmem:[#allocation2 + $0x460] sm:$0xff]
    %v229 = vld [vmem:[#allocation2 + $0x468] sm:$0xff]
    %v230 = vld [vmem:[#allocation2 + $0x470] sm:$0xff]
    %v231 = vld [vmem:[#allocation2 + $0x478] sm:$0xff]
    %v232 = vld [vmem:[#allocation2 + $0x480] sm:$0xff]
    %v233 = vld [vmem:[#allocation2 + $0x488] sm:$0xff]
    %v234 = vld [vmem:[#allocation2 + $0x490] sm:$0xff]
    %v235 = vld [vmem:[#allocation2 + $0x498] sm:$0xff]
    %v236 = vld [vmem:[#allocation2 + $0x4a0] sm:$0xff]
    %v237 = vld [vmem:[#allocation2 + $0x4a8] sm:$0xff]
    %v238 = vld [vmem:[#allocation2 + $0x4b0] sm:$0xff]
    %v239 = vld [vmem:[#allocation2 + $0x4b8] sm:$0xff]
    %v240 = vld [vmem:[#allocation2 + $0x4c0] sm:$0xff]
    %v241 = vld [vmem:[#allocation2 + $0x4c8] sm:$0xff]
    %v242 = vld [vmem:[#allocation2 + $0x4d0] sm:$0xff]
    %v243 = vld [vmem:[#allocation2 + $0x4d8] sm:$0xff]
    %v244 = vld [vmem:[#allocation2 + $0x4e0] sm:$0xff]
    %v245 = vld [vmem:[#allocation2 + $0x4e8] sm:$0xff]
    %v246 = vld [vmem:[#allocation2 + $0x4f0] sm:$0xff]
    %v247 = vld [vmem:[#allocation2 + $0x4f8] sm:$0xff]
    %v248 = vld [vmem:[#allocation2 + $0x500] sm:$0xff]
    %v249 = vld [vmem:[#allocation2 + $0x508] sm:$0xff]
    %v250 = vld [vmem:[#allocation2 + $0x510] sm:$0xff]
    %v251 = vld [vmem:[#allocation2 + $0x518] sm:$0xff]
    %v252 = vld [vmem:[#allocation2 + $0x520] sm:$0xff]
    %v253 = vld [vmem:[#allocation2 + $0x528] sm:$0xff]
    %v254 = vld [vmem:[#allocation2 + $0x530] sm:$0xff]
    %v255 = vld [vmem:[#allocation2 + $0x538] sm:$0xff]
    %v256 = vld [vmem:[#allocation2 + $0x540] sm:$0xff]
    %v257 = vld [vmem:[#allocation2 + $0x548] sm:$0xff]
    %v258 = vld [vmem:[#allocation2 + $0x550] sm:$0xff]
    %v259 = vld [vmem:[#allocation2 + $0x558] sm:$0xff]
    %v260 = vld [vmem:[#allocation2 + $0x560] sm:$0xff]
    %v261 = vld [vmem:[#allocation2 + $0x568] sm:$0xff]
    %v262 = vld [vmem:[#allocation2 + $0x570] sm:$0xff]
    %v263 = vld [vmem:[#allocation2 + $0x578] sm:$0xff]
    %v264 = vld [vmem:[#allocation2 + $0x580] sm:$0xff]
    %v265 = vld [vmem:[#allocation2 + $0x588] sm:$0xff]
    %v266 = vld [vmem:[#allocation2 + $0x590] sm:$0xff]
    %v267 = vld [vmem:[#allocation2 + $0x598] sm:$0xff]
    %v268 = vld [vmem:[#allocation2 + $0x5a0] sm:$0xff]
    %v269 = vld [vmem:[#allocation2 + $0x5a8] sm:$0xff]
    %v270 = vld [vmem:[#allocation2 + $0x5b0] sm:$0xff]
    %v271 = vld [vmem:[#allocation2 + $0x5b8] sm:$0xff]
    %v272 = vld [vmem:[#allocation2 + $0x5c0] sm:$0xff]
    %v273 = vld [vmem:[#allocation2 + $0x5c8] sm:$0xff]
    %v274 = vld [vmem:[#allocation2 + $0x5d0] sm:$0xff]
    %v275 = vld [vmem:[#allocation2 + $0x5d8] sm:$0xff]
    %v276 = vld [vmem:[#allocation2 + $0x5e0] sm:$0xff]
    %v277 = vld [vmem:[#allocation2 + $0x5e8] sm:$0xff]
    %v278 = vld [vmem:[#allocation2 + $0x5f0] sm:$0xff]
    %v279 = vld [vmem:[#allocation2 + $0x5f8] sm:$0xff]
    %v280 = vld [vmem:[#allocation2 + $0x600] sm:$0xff]
    %v281 = vld [vmem:[#allocation2 + $0x608] sm:$0xff]
    %v282 = vld [vmem:[#allocation2 + $0x610] sm:$0xff]
    %v283 = vld [vmem:[#allocation2 + $0x618] sm:$0xff]
    %v284 = vld [vmem:[%s2] sm:$0xf]
    %v286 = vlaneseq
    %v287 = vshrl.u32 %v286, 7
    %v288 = vsub.s32 0, %v287
    %v289 = vrot.slane %v284, %v288
    %v290 = vlaneseq
    %v291 = vshrl.u32 %v290, 7
    %v292 = vsub.s32 1, %v291
    %v293 = vrot.slane %v284, %v292
    %v294 = vlaneseq
    %v295 = vshrl.u32 %v294, 7
    %v296 = vsub.s32 2, %v295
    %v297 = vrot.slane %v284, %v296
    %v298 = vlaneseq
    %v299 = vshrl.u32 %v298, 7
    %v300 = vsub.s32 3, %v299
    %v301 = vrot.slane %v284, %v300
    %v314 = vunpack.c.l.b16 %v80
    %v315 = vunpack.c.h.b16 %v80
    %v316 = vunpack.c.l.b16 %v81
    %v317 = vunpack.c.h.b16 %v81
    %v318 = vunpack.c.l.b16 %v82
    %v319 = vunpack.c.h.b16 %v82
    %v320 = vunpack.c.l.b16 %v83
    %v321 = vunpack.c.l.b16 %v84
    %v322 = vunpack.c.h.b16 %v84
    %v323 = vunpack.c.l.b16 %v85
    %v324 = vunpack.c.h.b16 %v85
    %v325 = vunpack.c.l.b16 %v86
    %v326 = vunpack.c.h.b16 %v86
    %v327 = vunpack.c.l.b16 %v87
    %v328 = vpack.c.b16 %v321, %v314
    %v329 = vpack.c.b16 %v322, %v315
    %v330 = vpack.c.b16 %v323, %v316
    %v331 = vpack.c.b16 %v324, %v317
    %v332 = vpack.c.b16 %v325, %v318
    %v333 = vpack.c.b16 %v326, %v319
    %v334 = vpack.c.b16 %v327, %v320
    %v537 = vunpack.c.l.b16 %v88
    %v538 = vunpack.c.h.b16 %v88
    %v539 = vunpack.c.l.b16 %v89
    %v540 = vunpack.c.h.b16 %v89
    %v541 = vunpack.c.l.b16 %v90
    %v542 = vunpack.c.h.b16 %v90
    %v543 = vunpack.c.l.b16 %v91
    %v544 = vunpack.c.h.b16 %v91
    %v545 = vunpack.c.l.b16 %v92
    %v546 = vunpack.c.h.b16 %v92
    %v547 = vunpack.c.l.b16 %v93
    %v548 = vunpack.c.h.b16 %v93
    %v549 = vunpack.c.l.b16 %v94
    %v550 = vunpack.c.h.b16 %v94
    %v551 = vunpack.c.l.b16 %v95
    %v552 = vunpack.c.h.b16 %v95
    %v553 = vunpack.c.l.b16 %v96
    %v554 = vunpack.c.h.b16 %v96
    %v555 = vunpack.c.l.b16 %v97
    %v556 = vunpack.c.h.b16 %v97
    %v557 = vunpack.c.l.b16 %v98
    %v558 = vunpack.c.h.b16 %v98
    %v559 = vunpack.c.l.b16 %v99
    %v560 = vunpack.c.h.b16 %v99
    %v561 = vunpack.c.l.b16 %v100
    %v562 = vunpack.c.h.b16 %v100
    %v563 = vunpack.c.l.b16 %v101
    %v564 = vunpack.c.h.b16 %v101
    %v565 = vunpack.c.l.b16 %v102
    %v566 = vunpack.c.h.b16 %v102
    %v567 = vunpack.c.l.b16 %v103
    %v568 = vunpack.c.h.b16 %v103
    %v569 = vunpack.c.l.b16 %v104
    %v570 = vunpack.c.h.b16 %v104
    %v571 = vunpack.c.l.b16 %v105
    %v572 = vunpack.c.h.b16 %v105
    %v573 = vunpack.c.l.b16 %v106
    %v574 = vunpack.c.h.b16 %v106
    %v575 = vunpack.c.l.b16 %v107
    %v576 = vunpack.c.h.b16 %v107
    %v577 = vunpack.c.l.b16 %v108
    %v578 = vunpack.c.h.b16 %v108
    %v579 = vunpack.c.l.b16 %v109
    %v580 = vunpack.c.h.b16 %v109
    %v581 = vunpack.c.l.b16 %v110
    %v582 = vunpack.c.h.b16 %v110
    %v583 = vunpack.c.l.b16 %v111
    %v584 = vunpack.c.h.b16 %v111
    %v585 = vunpack.c.l.b16 %v112
    %v586 = vunpack.c.h.b16 %v112
    %v587 = vunpack.c.l.b16 %v113
    %v588 = vunpack.c.h.b16 %v113
    %v589 = vunpack.c.l.b16 %v114
    %v590 = vunpack.c.h.b16 %v114
    %v591 = vunpack.c.l.b16 %v115
    %v592 = vunpack.c.h.b16 %v115
    %v593 = vunpack.c.l.b16 %v116
    %v594 = vunpack.c.h.b16 %v116
    %v595 = vunpack.c.l.b16 %v117
    %v596 = vunpack.c.h.b16 %v117
    %v597 = vunpack.c.l.b16 %v118
    %v598 = vunpack.c.h.b16 %v118
    %v599 = vunpack.c.l.b16 %v119
    %v600 = vunpack.c.h.b16 %v119
    %v601 = vunpack.c.l.b16 %v120
    %v602 = vunpack.c.h.b16 %v120
    %v603 = vunpack.c.l.b16 %v121
    %v604 = vunpack.c.h.b16 %v121
    %v605 = vunpack.c.l.b16 %v122
    %v606 = vunpack.c.h.b16 %v122
    %v607 = vunpack.c.l.b16 %v123
    %v608 = vunpack.c.h.b16 %v123
    %v609 = vunpack.c.l.b16 %v124
    %v610 = vunpack.c.h.b16 %v124
    %v611 = vunpack.c.l.b16 %v125
    %v612 = vunpack.c.h.b16 %v125
    %v613 = vunpack.c.l.b16 %v126
    %v614 = vunpack.c.h.b16 %v126
    %v615 = vunpack.c.l.b16 %v127
    %v616 = vunpack.c.h.b16 %v127
    %v617 = vunpack.c.l.b16 %v128
    %v618 = vunpack.c.h.b16 %v128
    %v619 = vunpack.c.l.b16 %v129
    %v620 = vunpack.c.h.b16 %v129
    %v621 = vunpack.c.l.b16 %v130
    %v622 = vunpack.c.h.b16 %v130
    %v623 = vunpack.c.l.b16 %v131
    %v624 = vunpack.c.h.b16 %v131
    %v625 = vunpack.c.l.b16 %v132
    %v626 = vunpack.c.h.b16 %v132
    %v627 = vunpack.c.l.b16 %v133
    %v628 = vunpack.c.h.b16 %v133
    %v629 = vunpack.c.l.b16 %v134
    %v630 = vunpack.c.h.b16 %v134
    %v631 = vunpack.c.l.b16 %v135
    %v632 = vunpack.c.h.b16 %v135
    %v633 = vunpack.c.l.b16 %v136
    %v634 = vunpack.c.h.b16 %v136
    %v635 = vunpack.c.l.b16 %v137
    %v636 = vunpack.c.h.b16 %v137
    %v637 = vunpack.c.l.b16 %v138
    %v638 = vunpack.c.h.b16 %v138
    %v639 = vunpack.c.l.b16 %v139
    %v640 = vunpack.c.h.b16 %v139
    %v641 = vunpack.c.l.b16 %v140
    %v642 = vunpack.c.h.b16 %v140
    %v643 = vunpack.c.l.b16 %v141
    %v644 = vunpack.c.h.b16 %v141
    %v645 = vunpack.c.l.b16 %v142
    %v646 = vunpack.c.h.b16 %v142
    %v647 = vunpack.c.l.b16 %v143
    %v648 = vunpack.c.h.b16 %v143
    %v649 = vunpack.c.l.b16 %v144
    %v650 = vunpack.c.h.b16 %v144
    %v651 = vunpack.c.l.b16 %v145
    %v652 = vunpack.c.h.b16 %v145
    %v653 = vunpack.c.l.b16 %v146
    %v654 = vunpack.c.h.b16 %v146
    %v655 = vunpack.c.l.b16 %v147
    %v656 = vunpack.c.h.b16 %v147
    %v657 = vunpack.c.l.b16 %v148
    %v658 = vunpack.c.h.b16 %v148
    %v659 = vunpack.c.l.b16 %v149
    %v660 = vunpack.c.h.b16 %v149
    %v661 = vunpack.c.l.b16 %v150
    %v662 = vunpack.c.h.b16 %v150
    %v663 = vunpack.c.l.b16 %v151
    %v664 = vunpack.c.h.b16 %v151
    %v665 = vunpack.c.l.b16 %v152
    %v666 = vunpack.c.h.b16 %v152
    %v667 = vunpack.c.l.b16 %v153
    %v668 = vunpack.c.h.b16 %v153
    %v669 = vunpack.c.l.b16 %v154
    %v670 = vunpack.c.h.b16 %v154
    %v671 = vunpack.c.l.b16 %v155
    %v672 = vunpack.c.h.b16 %v155
    %v673 = vunpack.c.l.b16 %v156
    %v674 = vunpack.c.h.b16 %v156
    %v675 = vunpack.c.l.b16 %v157
    %v676 = vunpack.c.h.b16 %v157
    %v677 = vunpack.c.l.b16 %v158
    %v678 = vunpack.c.h.b16 %v158
    %v679 = vunpack.c.l.b16 %v159
    %v680 = vunpack.c.h.b16 %v159
    %v681 = vunpack.c.l.b16 %v160
    %v682 = vunpack.c.h.b16 %v160
    %v683 = vunpack.c.l.b16 %v161
    %v684 = vunpack.c.h.b16 %v161
    %v685 = vunpack.c.l.b16 %v162
    %v686 = vunpack.c.h.b16 %v162
    %v687 = vunpack.c.l.b16 %v163
    %v688 = vunpack.c.h.b16 %v163
    %v689 = vunpack.c.l.b16 %v164
    %v690 = vunpack.c.h.b16 %v164
    %v691 = vunpack.c.l.b16 %v165
    %v692 = vunpack.c.h.b16 %v165
    %v693 = vunpack.c.l.b16 %v166
    %v694 = vunpack.c.h.b16 %v166
    %v695 = vunpack.c.l.b16 %v167
    %v696 = vunpack.c.h.b16 %v167
    %v697 = vunpack.c.l.b16 %v168
    %v698 = vunpack.c.h.b16 %v168
    %v699 = vunpack.c.l.b16 %v169
    %v700 = vunpack.c.h.b16 %v169
    %v701 = vunpack.c.l.b16 %v170
    %v702 = vunpack.c.h.b16 %v170
    %v703 = vunpack.c.l.b16 %v171
    %v704 = vunpack.c.h.b16 %v171
    %v705 = vunpack.c.l.b16 %v172
    %v706 = vunpack.c.h.b16 %v172
    %v707 = vunpack.c.l.b16 %v173
    %v708 = vunpack.c.h.b16 %v173
    %v709 = vunpack.c.l.b16 %v174
    %v710 = vunpack.c.h.b16 %v174
    %v711 = vunpack.c.l.b16 %v175
    %v712 = vunpack.c.h.b16 %v175
    %v713 = vunpack.c.l.b16 %v176
    %v714 = vunpack.c.h.b16 %v176
    %v715 = vunpack.c.l.b16 %v177
    %v716 = vunpack.c.h.b16 %v177
    %v717 = vunpack.c.l.b16 %v178
    %v718 = vunpack.c.h.b16 %v178
    %v719 = vunpack.c.l.b16 %v179
    %v720 = vunpack.c.h.b16 %v179
    %v721 = vunpack.c.l.b16 %v180
    %v722 = vunpack.c.h.b16 %v180
    %v723 = vunpack.c.l.b16 %v181
    %v724 = vunpack.c.h.b16 %v181
    %v725 = vunpack.c.l.b16 %v182
    %v726 = vunpack.c.h.b16 %v182
    %v727 = vunpack.c.l.b16 %v183
    %v728 = vunpack.c.h.b16 %v183
    %v729 = vunpack.c.l.b16 %v184
    %v730 = vunpack.c.h.b16 %v184
    %v731 = vunpack.c.l.b16 %v185
    %v732 = vunpack.c.h.b16 %v185
    %v733 = vunpack.c.l.b16 %v186
    %v734 = vunpack.c.h.b16 %v186
    %v735 = vunpack.c.l.b16 %v187
    %v736 = vunpack.c.h.b16 %v187
    %v737 = vunpack.c.l.b16 %v188
    %v738 = vunpack.c.h.b16 %v188
    %v739 = vunpack.c.l.b16 %v189
    %v740 = vunpack.c.h.b16 %v189
    %v741 = vunpack.c.l.b16 %v190
    %v742 = vunpack.c.h.b16 %v190
    %v743 = vunpack.c.l.b16 %v191
    %v744 = vunpack.c.h.b16 %v191
    %v745 = vunpack.c.l.b16 %v192
    %v746 = vunpack.c.h.b16 %v192
    %v747 = vunpack.c.l.b16 %v193
    %v748 = vunpack.c.h.b16 %v193
    %v749 = vunpack.c.l.b16 %v194
    %v750 = vunpack.c.h.b16 %v194
    %v751 = vunpack.c.l.b16 %v195
    %v752 = vunpack.c.h.b16 %v195
    %v753 = vunpack.c.l.b16 %v196
    %v754 = vunpack.c.h.b16 %v196
    %v755 = vunpack.c.l.b16 %v197
    %v756 = vunpack.c.h.b16 %v197
    %v757 = vunpack.c.l.b16 %v198
    %v758 = vunpack.c.h.b16 %v198
    %v759 = vunpack.c.l.b16 %v199
    %v760 = vunpack.c.h.b16 %v199
    %v761 = vunpack.c.l.b16 %v200
    %v762 = vunpack.c.h.b16 %v200
    %v763 = vunpack.c.l.b16 %v201
    %v764 = vunpack.c.h.b16 %v201
    %v765 = vunpack.c.l.b16 %v202
    %v766 = vunpack.c.h.b16 %v202
    %v767 = vunpack.c.l.b16 %v203
    %v768 = vunpack.c.h.b16 %v203
    %v769 = vunpack.c.l.b16 %v204
    %v770 = vunpack.c.h.b16 %v204
    %v771 = vunpack.c.l.b16 %v205
    %v772 = vunpack.c.h.b16 %v205
    %v773 = vunpack.c.l.b16 %v206
    %v774 = vunpack.c.h.b16 %v206
    %v775 = vunpack.c.l.b16 %v207
    %v776 = vunpack.c.h.b16 %v207
    %v777 = vunpack.c.l.b16 %v208
    %v778 = vunpack.c.h.b16 %v208
    %v779 = vunpack.c.l.b16 %v209
    %v780 = vunpack.c.h.b16 %v209
    %v781 = vunpack.c.l.b16 %v210
    %v782 = vunpack.c.h.b16 %v210
    %v783 = vunpack.c.l.b16 %v211
    %v784 = vunpack.c.h.b16 %v211
    %v785 = vunpack.c.l.b16 %v212
    %v786 = vunpack.c.h.b16 %v212
    %v787 = vunpack.c.l.b16 %v213
    %v788 = vunpack.c.h.b16 %v213
    %v789 = vunpack.c.l.b16 %v214
    %v790 = vunpack.c.h.b16 %v214
    %v791 = vunpack.c.l.b16 %v215
    %v792 = vunpack.c.h.b16 %v215
    %v793 = vunpack.c.l.b16 %v216
    %v794 = vunpack.c.h.b16 %v216
    %v795 = vunpack.c.l.b16 %v217
    %v796 = vunpack.c.h.b16 %v217
    %v797 = vunpack.c.l.b16 %v218
    %v798 = vunpack.c.h.b16 %v218
    %v799 = vunpack.c.l.b16 %v219
    %v800 = vunpack.c.h.b16 %v219
    %v801 = vunpack.c.l.b16 %v220
    %v802 = vunpack.c.h.b16 %v220
    %v803 = vunpack.c.l.b16 %v221
    %v804 = vunpack.c.h.b16 %v221
    %v805 = vunpack.c.l.b16 %v222
    %v806 = vunpack.c.h.b16 %v222
    %v807 = vunpack.c.l.b16 %v223
    %v808 = vunpack.c.h.b16 %v223
    %v809 = vunpack.c.l.b16 %v224
    %v810 = vunpack.c.h.b16 %v224
    %v811 = vunpack.c.l.b16 %v225
    %v812 = vunpack.c.h.b16 %v225
    %v813 = vunpack.c.l.b16 %v226
    %v814 = vunpack.c.h.b16 %v226
    %v815 = vunpack.c.l.b16 %v227
    %v816 = vunpack.c.h.b16 %v227
    %v817 = vunpack.c.l.b16 %v228
    %v818 = vunpack.c.h.b16 %v228
    %v819 = vunpack.c.l.b16 %v229
    %v820 = vunpack.c.h.b16 %v229
    %v821 = vunpack.c.l.b16 %v230
    %v822 = vunpack.c.h.b16 %v230
    %v823 = vunpack.c.l.b16 %v231
    %v824 = vunpack.c.h.b16 %v231
    %v825 = vunpack.c.l.b16 %v232
    %v826 = vunpack.c.h.b16 %v232
    %v827 = vunpack.c.l.b16 %v233
    %v828 = vunpack.c.h.b16 %v233
    %v829 = vunpack.c.l.b16 %v234
    %v830 = vunpack.c.h.b16 %v234
    %v831 = vunpack.c.l.b16 %v235
    %v832 = vunpack.c.h.b16 %v235
    %v833 = vunpack.c.l.b16 %v236
    %v834 = vunpack.c.h.b16 %v236
    %v835 = vunpack.c.l.b16 %v237
    %v836 = vunpack.c.h.b16 %v237
    %v837 = vunpack.c.l.b16 %v238
    %v838 = vunpack.c.h.b16 %v238
    %v839 = vunpack.c.l.b16 %v239
    %v840 = vunpack.c.h.b16 %v239
    %v841 = vunpack.c.l.b16 %v240
    %v842 = vunpack.c.h.b16 %v240
    %v843 = vunpack.c.l.b16 %v241
    %v844 = vunpack.c.h.b16 %v241
    %v845 = vunpack.c.l.b16 %v242
    %v846 = vunpack.c.h.b16 %v242
    %v847 = vunpack.c.l.b16 %v243
    %v848 = vunpack.c.h.b16 %v243
    %v849 = vunpack.c.l.b16 %v244
    %v850 = vunpack.c.h.b16 %v244
    %v851 = vunpack.c.l.b16 %v245
    %v852 = vunpack.c.h.b16 %v245
    %v853 = vunpack.c.l.b16 %v246
    %v854 = vunpack.c.h.b16 %v246
    %v855 = vunpack.c.l.b16 %v247
    %v856 = vunpack.c.h.b16 %v247
    %v857 = vunpack.c.l.b16 %v248
    %v858 = vunpack.c.h.b16 %v248
    %v859 = vunpack.c.l.b16 %v249
    %v860 = vunpack.c.h.b16 %v249
    %v861 = vunpack.c.l.b16 %v250
    %v862 = vunpack.c.h.b16 %v250
    %v863 = vunpack.c.l.b16 %v251
    %v864 = vunpack.c.h.b16 %v251
    %v865 = vunpack.c.l.b16 %v252
    %v866 = vunpack.c.h.b16 %v252
    %v867 = vunpack.c.l.b16 %v253
    %v868 = vunpack.c.h.b16 %v253
    %v869 = vunpack.c.l.b16 %v254
    %v870 = vunpack.c.h.b16 %v254
    %v871 = vunpack.c.l.b16 %v255
    %v872 = vunpack.c.h.b16 %v255
    %v873 = vunpack.c.l.b16 %v256
    %v874 = vunpack.c.h.b16 %v256
    %v875 = vunpack.c.l.b16 %v257
    %v876 = vunpack.c.h.b16 %v257
    %v877 = vunpack.c.l.b16 %v258
    %v878 = vunpack.c.h.b16 %v258
    %v879 = vunpack.c.l.b16 %v259
    %v880 = vunpack.c.h.b16 %v259
    %v881 = vunpack.c.l.b16 %v260
    %v882 = vunpack.c.h.b16 %v260
    %v883 = vunpack.c.l.b16 %v261
    %v884 = vunpack.c.h.b16 %v261
    %v885 = vunpack.c.l.b16 %v262
    %v886 = vunpack.c.h.b16 %v262
    %v887 = vunpack.c.l.b16 %v263
    %v888 = vunpack.c.h.b16 %v263
    %v889 = vunpack.c.l.b16 %v264
    %v890 = vunpack.c.h.b16 %v264
    %v891 = vunpack.c.l.b16 %v265
    %v892 = vunpack.c.h.b16 %v265
    %v893 = vunpack.c.l.b16 %v266
    %v894 = vunpack.c.h.b16 %v266
    %v895 = vunpack.c.l.b16 %v267
    %v896 = vunpack.c.h.b16 %v267
    %v897 = vunpack.c.l.b16 %v268
    %v898 = vunpack.c.h.b16 %v268
    %v899 = vunpack.c.l.b16 %v269
    %v900 = vunpack.c.h.b16 %v269
    %v901 = vunpack.c.l.b16 %v270
    %v902 = vunpack.c.h.b16 %v270
    %v903 = vunpack.c.l.b16 %v271
    %v904 = vunpack.c.h.b16 %v271
    %v905 = vunpack.c.l.b16 %v272
    %v906 = vunpack.c.h.b16 %v272
    %v907 = vunpack.c.l.b16 %v273
    %v908 = vunpack.c.h.b16 %v273
    %v909 = vunpack.c.l.b16 %v274
    %v910 = vunpack.c.h.b16 %v274
    %v911 = vunpack.c.l.b16 %v275
    %v912 = vunpack.c.h.b16 %v275
    %v913 = vunpack.c.l.b16 %v276
    %v914 = vunpack.c.h.b16 %v276
    %v915 = vunpack.c.l.b16 %v277
    %v916 = vunpack.c.h.b16 %v277
    %v917 = vunpack.c.l.b16 %v278
    %v918 = vunpack.c.h.b16 %v278
    %v919 = vunpack.c.l.b16 %v279
    %v920 = vunpack.c.h.b16 %v279
    %v921 = vunpack.c.l.b16 %v280
    %v922 = vunpack.c.h.b16 %v280
    %v923 = vunpack.c.l.b16 %v281
    %v924 = vunpack.c.h.b16 %v281
    %v925 = vunpack.c.l.b16 %v282
    %v926 = vunpack.c.h.b16 %v282
    %v927 = vunpack.c.l.b16 %v283
    %v928 = vunpack.c.h.b16 %v283
    %v929 = vpack.c.b16 %v541, %v537
    %v930 = vpack.c.b16 %v542, %v538
    %v931 = vpack.c.b16 %v543, %v539
    %v932 = vpack.c.b16 %v544, %v540
    %v933 = vpack.c.b16 %v549, %v545
    %v934 = vpack.c.b16 %v550, %v546
    %v935 = vpack.c.b16 %v551, %v547
    %v936 = vpack.c.b16 %v552, %v548
    %v937 = vpack.c.b16 %v557, %v553
    %v938 = vpack.c.b16 %v558, %v554
    %v939 = vpack.c.b16 %v559, %v555
    %v940 = vpack.c.b16 %v560, %v556
    %v941 = vpack.c.b16 %v565, %v561
    %v942 = vpack.c.b16 %v566, %v562
    %v943 = vpack.c.b16 %v567, %v563
    %v944 = vpack.c.b16 %v568, %v564
    %v945 = vpack.c.b16 %v573, %v569
    %v946 = vpack.c.b16 %v574, %v570
    %v947 = vpack.c.b16 %v575, %v571
    %v948 = vpack.c.b16 %v576, %v572
    %v949 = vpack.c.b16 %v581, %v577
    %v950 = vpack.c.b16 %v582, %v578
    %v951 = vpack.c.b16 %v583, %v579
    %v952 = vpack.c.b16 %v584, %v580
    %v953 = vpack.c.b16 %v589, %v585
    %v954 = vpack.c.b16 %v590, %v586
    %v955 = vpack.c.b16 %v591, %v587
    %v956 = vpack.c.b16 %v592, %v588
    %v957 = vpack.c.b16 %v597, %v593
    %v958 = vpack.c.b16 %v598, %v594
    %v959 = vpack.c.b16 %v599, %v595
    %v960 = vpack.c.b16 %v600, %v596
    %v961 = vpack.c.b16 %v605, %v601
    %v962 = vpack.c.b16 %v606, %v602
    %v963 = vpack.c.b16 %v607, %v603
    %v964 = vpack.c.b16 %v608, %v604
    %v965 = vpack.c.b16 %v613, %v609
    %v966 = vpack.c.b16 %v614, %v610
    %v967 = vpack.c.b16 %v615, %v611
    %v968 = vpack.c.b16 %v616, %v612
    %v969 = vpack.c.b16 %v621, %v617
    %v970 = vpack.c.b16 %v622, %v618
    %v971 = vpack.c.b16 %v623, %v619
    %v972 = vpack.c.b16 %v624, %v620
    %v973 = vpack.c.b16 %v629, %v625
    %v974 = vpack.c.b16 %v630, %v626
    %v975 = vpack.c.b16 %v631, %v627
    %v976 = vpack.c.b16 %v632, %v628
    %v977 = vpack.c.b16 %v637, %v633
    %v978 = vpack.c.b16 %v638, %v634
    %v979 = vpack.c.b16 %v639, %v635
    %v980 = vpack.c.b16 %v640, %v636
    %v981 = vpack.c.b16 %v645, %v641
    %v982 = vpack.c.b16 %v646, %v642
    %v983 = vpack.c.b16 %v647, %v643
    %v984 = vpack.c.b16 %v648, %v644
    %v985 = vpack.c.b16 %v653, %v649
    %v986 = vpack.c.b16 %v654, %v650
    %v987 = vpack.c.b16 %v655, %v651
    %v988 = vpack.c.b16 %v656, %v652
    %v989 = vpack.c.b16 %v661, %v657
    %v990 = vpack.c.b16 %v662, %v658
    %v991 = vpack.c.b16 %v663, %v659
    %v992 = vpack.c.b16 %v664, %v660
    %v993 = vpack.c.b16 %v669, %v665
    %v994 = vpack.c.b16 %v670, %v666
    %v995 = vpack.c.b16 %v671, %v667
    %v996 = vpack.c.b16 %v672, %v668
    %v997 = vpack.c.b16 %v677, %v673
    %v998 = vpack.c.b16 %v678, %v674
    %v999 = vpack.c.b16 %v679, %v675
    %v1000 = vpack.c.b16 %v680, %v676
    %v1001 = vpack.c.b16 %v685, %v681
    %v1002 = vpack.c.b16 %v686, %v682
    %v1003 = vpack.c.b16 %v687, %v683
    %v1004 = vpack.c.b16 %v688, %v684
    %v1005 = vpack.c.b16 %v693, %v689
    %v1006 = vpack.c.b16 %v694, %v690
    %v1007 = vpack.c.b16 %v695, %v691
    %v1008 = vpack.c.b16 %v696, %v692
    %v1009 = vpack.c.b16 %v701, %v697
    %v1010 = vpack.c.b16 %v702, %v698
    %v1011 = vpack.c.b16 %v703, %v699
    %v1012 = vpack.c.b16 %v704, %v700
    %v1013 = vpack.c.b16 %v709, %v705
    %v1014 = vpack.c.b16 %v710, %v706
    %v1015 = vpack.c.b16 %v711, %v707
    %v1016 = vpack.c.b16 %v712, %v708
    %v1017 = vpack.c.b16 %v717, %v713
    %v1018 = vpack.c.b16 %v718, %v714
    %v1019 = vpack.c.b16 %v719, %v715
    %v1020 = vpack.c.b16 %v720, %v716
    %v1021 = vpack.c.b16 %v725, %v721
    %v1022 = vpack.c.b16 %v726, %v722
    %v1023 = vpack.c.b16 %v727, %v723
    %v1024 = vpack.c.b16 %v728, %v724
    %v1025 = vpack.c.b16 %v733, %v729
    %v1026 = vpack.c.b16 %v734, %v730
    %v1027 = vpack.c.b16 %v735, %v731
    %v1028 = vpack.c.b16 %v736, %v732
    %v1029 = vpack.c.b16 %v741, %v737
    %v1030 = vpack.c.b16 %v742, %v738
    %v1031 = vpack.c.b16 %v743, %v739
    %v1032 = vpack.c.b16 %v744, %v740
    %v1033 = vpack.c.b16 %v749, %v745
    %v1034 = vpack.c.b16 %v750, %v746
    %v1035 = vpack.c.b16 %v751, %v747
    %v1036 = vpack.c.b16 %v752, %v748
    %v1037 = vpack.c.b16 %v757, %v753
    %v1038 = vpack.c.b16 %v758, %v754
    %v1039 = vpack.c.b16 %v759, %v755
    %v1040 = vpack.c.b16 %v760, %v756
    %v1041 = vpack.c.b16 %v765, %v761
    %v1042 = vpack.c.b16 %v766, %v762
    %v1043 = vpack.c.b16 %v767, %v763
    %v1044 = vpack.c.b16 %v768, %v764
    %v1045 = vpack.c.b16 %v773, %v769
    %v1046 = vpack.c.b16 %v774, %v770
    %v1047 = vpack.c.b16 %v775, %v771
    %v1048 = vpack.c.b16 %v776, %v772
    %v1049 = vpack.c.b16 %v781, %v777
    %v1050 = vpack.c.b16 %v782, %v778
    %v1051 = vpack.c.b16 %v783, %v779
    %v1052 = vpack.c.b16 %v784, %v780
    %v1053 = vpack.c.b16 %v789, %v785
    %v1054 = vpack.c.b16 %v790, %v786
    %v1055 = vpack.c.b16 %v791, %v787
    %v1056 = vpack.c.b16 %v792, %v788
    %v1057 = vpack.c.b16 %v797, %v793
    %v1058 = vpack.c.b16 %v798, %v794
    %v1059 = vpack.c.b16 %v799, %v795
    %v1060 = vpack.c.b16 %v800, %v796
    %v1061 = vpack.c.b16 %v805, %v801
    %v1062 = vpack.c.b16 %v806, %v802
    %v1063 = vpack.c.b16 %v807, %v803
    %v1064 = vpack.c.b16 %v808, %v804
    %v1065 = vpack.c.b16 %v813, %v809
    %v1066 = vpack.c.b16 %v814, %v810
    %v1067 = vpack.c.b16 %v815, %v811
    %v1068 = vpack.c.b16 %v816, %v812
    %v1069 = vpack.c.b16 %v821, %v817
    %v1070 = vpack.c.b16 %v822, %v818
    %v1071 = vpack.c.b16 %v823, %v819
    %v1072 = vpack.c.b16 %v824, %v820
    %v1073 = vpack.c.b16 %v829, %v825
    %v1074 = vpack.c.b16 %v830, %v826
    %v1075 = vpack.c.b16 %v831, %v827
    %v1076 = vpack.c.b16 %v832, %v828
    %v1077 = vpack.c.b16 %v837, %v833
    %v1078 = vpack.c.b16 %v838, %v834
    %v1079 = vpack.c.b16 %v839, %v835
    %v1080 = vpack.c.b16 %v840, %v836
    %v1081 = vpack.c.b16 %v845, %v841
    %v1082 = vpack.c.b16 %v846, %v842
    %v1083 = vpack.c.b16 %v847, %v843
    %v1084 = vpack.c.b16 %v848, %v844
    %v1085 = vpack.c.b16 %v853, %v849
    %v1086 = vpack.c.b16 %v854, %v850
    %v1087 = vpack.c.b16 %v855, %v851
    %v1088 = vpack.c.b16 %v856, %v852
    %v1089 = vpack.c.b16 %v861, %v857
    %v1090 = vpack.c.b16 %v862, %v858
    %v1091 = vpack.c.b16 %v863, %v859
    %v1092 = vpack.c.b16 %v864, %v860
    %v1093 = vpack.c.b16 %v869, %v865
    %v1094 = vpack.c.b16 %v870, %v866
    %v1095 = vpack.c.b16 %v871, %v867
    %v1096 = vpack.c.b16 %v872, %v868
    %v1097 = vpack.c.b16 %v877, %v873
    %v1098 = vpack.c.b16 %v878, %v874
    %v1099 = vpack.c.b16 %v879, %v875
    %v1100 = vpack.c.b16 %v880, %v876
    %v1101 = vpack.c.b16 %v885, %v881
    %v1102 = vpack.c.b16 %v886, %v882
    %v1103 = vpack.c.b16 %v887, %v883
    %v1104 = vpack.c.b16 %v888, %v884
    %v1105 = vpack.c.b16 %v893, %v889
    %v1106 = vpack.c.b16 %v894, %v890
    %v1107 = vpack.c.b16 %v895, %v891
    %v1108 = vpack.c.b16 %v896, %v892
    %v1109 = vpack.c.b16 %v901, %v897
    %v1110 = vpack.c.b16 %v902, %v898
    %v1111 = vpack.c.b16 %v903, %v899
    %v1112 = vpack.c.b16 %v904, %v900
    %v1113 = vpack.c.b16 %v909, %v905
    %v1114 = vpack.c.b16 %v910, %v906
    %v1115 = vpack.c.b16 %v911, %v907
    %v1116 = vpack.c.b16 %v912, %v908
    %v1117 = vpack.c.b16 %v917, %v913
    %v1118 = vpack.c.b16 %v918, %v914
    %v1119 = vpack.c.b16 %v919, %v915
    %v1120 = vpack.c.b16 %v920, %v916
    %v1121 = vpack.c.b16 %v925, %v921
    %v1122 = vpack.c.b16 %v926, %v922
    %v1123 = vpack.c.b16 %v927, %v923
    %v1124 = vpack.c.b16 %v928, %v924
    %vm1321 = vcmask 130048
    %v1323 = vsel %vm1321, %v334, 0
    %1325 = vmatprep.subr.bf16.mxu0 %v958
    %1326 = vmatpush1.bf16.msra.mxu0 %v957
    %1327 = vmatprep.subr.bf16.mxu0 %v954
    %1328 = vmatpush1.bf16.msra.mxu0 %v953
    %1329 = vmatprep.subr.bf16.mxu0 %v950
    %1330 = vmatpush1.bf16.msra.mxu0 %v949
    %1331 = vmatprep.subr.bf16.mxu0 %v946
    %1332 = vmatpush1.bf16.msra.mxu0 %v945
    %1333 = vmatprep.subr.bf16.mxu0 %v942
    %1334 = vmatpush1.bf16.msra.mxu0 %v941
    %1335 = vmatprep.subr.bf16.mxu0 %v938
    %1336 = vmatpush1.bf16.msra.mxu0 %v937
    %1337 = vmatprep.subr.bf16.mxu0 %v934
    %1338 = vmatpush1.bf16.msra.mxu0 %v933
    %1339 = vmatprep.subr.bf16.mxu0 %v930
    %1340 = vmatpush1.bf16.msra.mxu0 %v929
    %1341 = vmatprep.subr.bf16.mxu0 %v990
    %1342 = vmatpush2.bf16.msra.mxu0 %v989
    %1343 = vmatprep.subr.bf16.mxu0 %v986
    %1344 = vmatpush2.bf16.msra.mxu0 %v985
    %1345 = vmatprep.subr.bf16.mxu0 %v982
    %1346 = vmatpush2.bf16.msra.mxu0 %v981
    %1347 = vmatprep.subr.bf16.mxu0 %v978
    %1348 = vmatpush2.bf16.msra.mxu0 %v977
    %1349 = vmatprep.subr.bf16.mxu0 %v974
    %1350 = vmatpush2.bf16.msra.mxu0 %v973
    %1351 = vmatprep.subr.bf16.mxu0 %v970
    %1352 = vmatpush2.bf16.msra.mxu0 %v969
    %1353 = vmatprep.subr.bf16.mxu0 %v966
    %1354 = vmatpush2.bf16.msra.mxu0 %v965
    %1355 = vmatprep.subr.bf16.mxu0 %v962
    %1356 = vmatpush2.bf16.msra.mxu0 %v961
    %1357 = vmatprep.mubr.bf16.mxu0 %v329
    %1358 = vmatmul.mubr.bf16.gmra.mxu0 %v328
    %v1359 = vpop.f32.mrf.mxu0
    %v1360 = vadd.f32 %v289, %v1359
    %v1361 = vpop.f32.mrf.mxu0
    %v1362 = vadd.f32 %v293, %v1361
    %v1363 = vpop.f32.mrf.mxu0
    %v1364 = vadd.f32 %v289, %v1363
    %v1365 = vpop.f32.mrf.mxu0
    %v1366 = vadd.f32 %v293, %v1365
    %1367 = vdwg.mxu0
    %1368 = vmatprep.subr.bf16.mxu0 %v1022
    %1369 = vmatpush1.bf16.msra.mxu0 %v1021
    %1370 = vmatprep.subr.bf16.mxu0 %v1018
    %1371 = vmatpush1.bf16.msra.mxu0 %v1017
    %1372 = vmatprep.subr.bf16.mxu0 %v1014
    %1373 = vmatpush1.bf16.msra.mxu0 %v1013
    %1374 = vmatprep.subr.bf16.mxu0 %v1010
    %1375 = vmatpush1.bf16.msra.mxu0 %v1009
    %1376 = vmatprep.subr.bf16.mxu0 %v1006
    %1377 = vmatpush1.bf16.msra.mxu0 %v1005
    %1378 = vmatprep.subr.bf16.mxu0 %v1002
    %1379 = vmatpush1.bf16.msra.mxu0 %v1001
    %1380 = vmatprep.subr.bf16.mxu0 %v998
    %1381 = vmatpush1.bf16.msra.mxu0 %v997
    %1382 = vmatprep.subr.bf16.mxu0 %v994
    %1383 = vmatpush1.bf16.msra.mxu0 %v993
    %1384 = vmatprep.subr.bf16.mxu0 %v1054
    %1385 = vmatpush2.bf16.msra.mxu0 %v1053
    %1386 = vmatprep.subr.bf16.mxu0 %v1050
    %1387 = vmatpush2.bf16.msra.mxu0 %v1049
    %1388 = vmatprep.subr.bf16.mxu0 %v1046
    %1389 = vmatpush2.bf16.msra.mxu0 %v1045
    %1390 = vmatprep.subr.bf16.mxu0 %v1042
    %1391 = vmatpush2.bf16.msra.mxu0 %v1041
    %1392 = vmatprep.subr.bf16.mxu0 %v1038
    %1393 = vmatpush2.bf16.msra.mxu0 %v1037
    %1394 = vmatprep.subr.bf16.mxu0 %v1034
    %1395 = vmatpush2.bf16.msra.mxu0 %v1033
    %1396 = vmatprep.subr.bf16.mxu0 %v1030
    %1397 = vmatpush2.bf16.msra.mxu0 %v1029
    %1398 = vmatprep.subr.bf16.mxu0 %v1026
    %1399 = vmatpush2.bf16.msra.mxu0 %v1025
    %1400 = vmatprep.mubr.bf16.mxu0 %v331
    %1401 = vmatmul.mubr.bf16.gmra.mxu0 %v330
    %v1402 = vpop.f32.mrf.mxu0
    %v1403 = vadd.f32 %v1360, %v1402
    %v1404 = vpop.f32.mrf.mxu0
    %v1405 = vadd.f32 %v1362, %v1404
    %v1406 = vpop.f32.mrf.mxu0
    %v1407 = vadd.f32 %v1364, %v1406
    %v1408 = vpop.f32.mrf.mxu0
    %v1409 = vadd.f32 %v1366, %v1408
    %1410 = vdwg.mxu0
    %1411 = vmatprep.subr.bf16.mxu0 %v1086
    %1412 = vmatpush1.bf16.msra.mxu0 %v1085
    %1413 = vmatprep.subr.bf16.mxu0 %v1082
    %1414 = vmatpush1.bf16.msra.mxu0 %v1081
    %1415 = vmatprep.subr.bf16.mxu0 %v1078
    %1416 = vmatpush1.bf16.msra.mxu0 %v1077
    %1417 = vmatprep.subr.bf16.mxu0 %v1074
    %1418 = vmatpush1.bf16.msra.mxu0 %v1073
    %1419 = vmatprep.subr.bf16.mxu0 %v1070
    %1420 = vmatpush1.bf16.msra.mxu0 %v1069
    %1421 = vmatprep.subr.bf16.mxu0 %v1066
    %1422 = vmatpush1.bf16.msra.mxu0 %v1065
    %1423 = vmatprep.subr.bf16.mxu0 %v1062
    %1424 = vmatpush1.bf16.msra.mxu0 %v1061
    %1425 = vmatprep.subr.bf16.mxu0 %v1058
    %1426 = vmatpush1.bf16.msra.mxu0 %v1057
    %1427 = vmatprep.subr.bf16.mxu0 %v1118
    %1428 = vmatpush2.bf16.msra.mxu0 %v1117
    %1429 = vmatprep.subr.bf16.mxu0 %v1114
    %1430 = vmatpush2.bf16.msra.mxu0 %v1113
    %1431 = vmatprep.subr.bf16.mxu0 %v1110
    %1432 = vmatpush2.bf16.msra.mxu0 %v1109
    %1433 = vmatprep.subr.bf16.mxu0 %v1106
    %1434 = vmatpush2.bf16.msra.mxu0 %v1105
    %1435 = vmatprep.subr.bf16.mxu0 %v1102
    %1436 = vmatpush2.bf16.msra.mxu0 %v1101
    %1437 = vmatprep.subr.bf16.mxu0 %v1098
    %1438 = vmatpush2.bf16.msra.mxu0 %v1097
    %1439 = vmatprep.subr.bf16.mxu0 %v1094
    %1440 = vmatpush2.bf16.msra.mxu0 %v1093
    %1441 = vmatprep.subr.bf16.mxu0 %v1090
    %1442 = vmatpush2.bf16.msra.mxu0 %v1089
    %1443 = vmatprep.mubr.bf16.mxu0 %v333
    %1444 = vmatmul.mubr.bf16.gmra.mxu0 %v332
    %v1445 = vpop.f32.mrf.mxu0
    %v1446 = vadd.f32 %v1403, %v1445
    %v1447 = vpop.f32.mrf.mxu0
    %v1448 = vadd.f32 %v1405, %v1447
    %v1449 = vpop.f32.mrf.mxu0
    %v1450 = vadd.f32 %v1407, %v1449
    %v1451 = vpop.f32.mrf.mxu0
    %v1452 = vadd.f32 %v1409, %v1451
    %1453 = vdwg.mxu0
    %1454 = vmatprep.subr.bf16.mxu0 0
    %1455 = vmatpush1.bf16.msra.mxu0 0
    %1456 = vmatprep.subr.bf16.mxu0 0
    %1457 = vmatpush1.bf16.msra.mxu0 0
    %1458 = vmatprep.subr.bf16.mxu0 0
    %1459 = vmatpush1.bf16.msra.mxu0 0
    %1460 = vmatprep.subr.bf16.mxu0 0
    %1461 = vmatpush1.bf16.msra.mxu0 0
    %1462 = vmatprep.subr.bf16.mxu0 0
    %1463 = vmatpush1.bf16.msra.mxu0 0
    %1464 = vmatprep.subr.bf16.mxu0 0
    %1465 = vmatpush1.bf16.msra.mxu0 0
    %1466 = vmatprep.subr.bf16.mxu0 0
    %1467 = vmatpush1.bf16.msra.mxu0 0
    %1468 = vmatprep.subr.bf16.mxu0 %v1122
    %1469 = vmatpush1.bf16.msra.mxu0 %v1121
    %1470 = vmatprep.subr.bf16.mxu0 0
    %1471 = vmatpush2.bf16.msra.mxu0 0
    %1472 = vmatprep.subr.bf16.mxu0 0
    %1473 = vmatpush2.bf16.msra.mxu0 0
    %1474 = vmatprep.subr.bf16.mxu0 0
    %1475 = vmatpush2.bf16.msra.mxu0 0
    %1476 = vmatprep.subr.bf16.mxu0 0
    %1477 = vmatpush2.bf16.msra.mxu0 0
    %1478 = vmatprep.subr.bf16.mxu0 0
    %1479 = vmatpush2.bf16.msra.mxu0 0
    %1480 = vmatprep.subr.bf16.mxu0 0
    %1481 = vmatpush2.bf16.msra.mxu0 0
    %1482 = vmatprep.subr.bf16.mxu0 0
    %1483 = vmatpush2.bf16.msra.mxu0 0
    %1484 = vmatprep.subr.bf16.mxu0 0
    %1485 = vmatpush2.bf16.msra.mxu0 0
    %1486 = vmatprep.mubr.bf16.mxu0 0
    %1487 = vmatmul.mubr.bf16.gmra.mxu0 %v1323
    %v1488 = vpop.f32.mrf.mxu0
    %v1489 = vadd.f32 %v1446, %v1488
    %v1490 = vpop.f32.mrf.mxu0
    %v1491 = vadd.f32 %v1448, %v1490
    %v1492 = vpop.f32.mrf.mxu0
    %v1493 = vadd.f32 %v1450, %v1492
    %v1494 = vpop.f32.mrf.mxu0
    %v1495 = vadd.f32 %v1452, %v1494
    %1496 = vdwg.mxu0
    %1497 = vmatprep.subr.bf16.mxu0 %v960
    %1498 = vmatpush1.bf16.msra.mxu0 %v959
    %1499 = vmatprep.subr.bf16.mxu0 %v956
    %1500 = vmatpush1.bf16.msra.mxu0 %v955
    %1501 = vmatprep.subr.bf16.mxu0 %v952
    %1502 = vmatpush1.bf16.msra.mxu0 %v951
    %1503 = vmatprep.subr.bf16.mxu0 %v948
    %1504 = vmatpush1.bf16.msra.mxu0 %v947
    %1505 = vmatprep.subr.bf16.mxu0 %v944
    %1506 = vmatpush1.bf16.msra.mxu0 %v943
    %1507 = vmatprep.subr.bf16.mxu0 %v940
    %1508 = vmatpush1.bf16.msra.mxu0 %v939
    %1509 = vmatprep.subr.bf16.mxu0 %v936
    %1510 = vmatpush1.bf16.msra.mxu0 %v935
    %1511 = vmatprep.subr.bf16.mxu0 %v932
    %1512 = vmatpush1.bf16.msra.mxu0 %v931
    %1513 = vmatprep.subr.bf16.mxu0 %v992
    %1514 = vmatpush2.bf16.msra.mxu0 %v991
    %1515 = vmatprep.subr.bf16.mxu0 %v988
    %1516 = vmatpush2.bf16.msra.mxu0 %v987
    %1517 = vmatprep.subr.bf16.mxu0 %v984
    %1518 = vmatpush2.bf16.msra.mxu0 %v983
    %1519 = vmatprep.subr.bf16.mxu0 %v980
    %1520 = vmatpush2.bf16.msra.mxu0 %v979
    %1521 = vmatprep.subr.bf16.mxu0 %v976
    %1522 = vmatpush2.bf16.msra.mxu0 %v975
    %1523 = vmatprep.subr.bf16.mxu0 %v972
    %1524 = vmatpush2.bf16.msra.mxu0 %v971
    %1525 = vmatprep.subr.bf16.mxu0 %v968
    %1526 = vmatpush2.bf16.msra.mxu0 %v967
    %1527 = vmatprep.subr.bf16.mxu0 %v964
    %1528 = vmatpush2.bf16.msra.mxu0 %v963
    %1529 = vmatprep.mubr.bf16.mxu0 %v329
    %1530 = vmatmul.mubr.bf16.gmra.mxu0 %v328
    %v1531 = vpop.f32.mrf.mxu0
    %v1532 = vadd.f32 %v297, %v1531
    %v1533 = vpop.f32.mrf.mxu0
    %v1534 = vadd.f32 %v301, %v1533
    %v1535 = vpop.f32.mrf.mxu0
    %v1536 = vadd.f32 %v297, %v1535
    %v1537 = vpop.f32.mrf.mxu0
    %v1538 = vadd.f32 %v301, %v1537
    %1539 = vdwg.mxu0
    %1540 = vmatprep.subr.bf16.mxu0 %v1024
    %1541 = vmatpush1.bf16.msra.mxu0 %v1023
    %1542 = vmatprep.subr.bf16.mxu0 %v1020
    %1543 = vmatpush1.bf16.msra.mxu0 %v1019
    %1544 = vmatprep.subr.bf16.mxu0 %v1016
    %1545 = vmatpush1.bf16.msra.mxu0 %v1015
    %1546 = vmatprep.subr.bf16.mxu0 %v1012
    %1547 = vmatpush1.bf16.msra.mxu0 %v1011
    %1548 = vmatprep.subr.bf16.mxu0 %v1008
    %1549 = vmatpush1.bf16.msra.mxu0 %v1007
    %1550 = vmatprep.subr.bf16.mxu0 %v1004
    %1551 = vmatpush1.bf16.msra.mxu0 %v1003
    %1552 = vmatprep.subr.bf16.mxu0 %v1000
    %1553 = vmatpush1.bf16.msra.mxu0 %v999
    %1554 = vmatprep.subr.bf16.mxu0 %v996
    %1555 = vmatpush1.bf16.msra.mxu0 %v995
    %1556 = vmatprep.subr.bf16.mxu0 %v1056
    %1557 = vmatpush2.bf16.msra.mxu0 %v1055
    %1558 = vmatprep.subr.bf16.mxu0 %v1052
    %1559 = vmatpush2.bf16.msra.mxu0 %v1051
    %1560 = vmatprep.subr.bf16.mxu0 %v1048
    %1561 = vmatpush2.bf16.msra.mxu0 %v1047
    %1562 = vmatprep.subr.bf16.mxu0 %v1044
    %1563 = vmatpush2.bf16.msra.mxu0 %v1043
    %1564 = vmatprep.subr.bf16.mxu0 %v1040
    %1565 = vmatpush2.bf16.msra.mxu0 %v1039
    %1566 = vmatprep.subr.bf16.mxu0 %v1036
    %1567 = vmatpush2.bf16.msra.mxu0 %v1035
    %1568 = vmatprep.subr.bf16.mxu0 %v1032
    %1569 = vmatpush2.bf16.msra.mxu0 %v1031
    %1570 = vmatprep.subr.bf16.mxu0 %v1028
    %1571 = vmatpush2.bf16.msra.mxu0 %v1027
    %1572 = vmatprep.mubr.bf16.mxu0 %v331
    %1573 = vmatmul.mubr.bf16.gmra.mxu0 %v330
    %v1574 = vpop.f32.mrf.mxu0
    %v1575 = vadd.f32 %v1532, %v1574
    %v1576 = vpop.f32.mrf.mxu0
    %v1577 = vadd.f32 %v1534, %v1576
    %v1578 = vpop.f32.mrf.mxu0
    %v1579 = vadd.f32 %v1536, %v1578
    %v1580 = vpop.f32.mrf.mxu0
    %v1581 = vadd.f32 %v1538, %v1580
    %1582 = vdwg.mxu0
    %1583 = vmatprep.subr.bf16.mxu0 %v1088
    %1584 = vmatpush1.bf16.msra.mxu0 %v1087
    %1585 = vmatprep.subr.bf16.mxu0 %v1084
    %1586 = vmatpush1.bf16.msra.mxu0 %v1083
    %1587 = vmatprep.subr.bf16.mxu0 %v1080
    %1588 = vmatpush1.bf16.msra.mxu0 %v1079
    %1589 = vmatprep.subr.bf16.mxu0 %v1076
    %1590 = vmatpush1.bf16.msra.mxu0 %v1075
    %1591 = vmatprep.subr.bf16.mxu0 %v1072
    %1592 = vmatpush1.bf16.msra.mxu0 %v1071
    %1593 = vmatprep.subr.bf16.mxu0 %v1068
    %1594 = vmatpush1.bf16.msra.mxu0 %v1067
    %1595 = vmatprep.subr.bf16.mxu0 %v1064
    %1596 = vmatpush1.bf16.msra.mxu0 %v1063
    %1597 = vmatprep.subr.bf16.mxu0 %v1060
    %1598 = vmatpush1.bf16.msra.mxu0 %v1059
    %1599 = vmatprep.subr.bf16.mxu0 %v1120
    %1600 = vmatpush2.bf16.msra.mxu0 %v1119
    %1601 = vmatprep.subr.bf16.mxu0 %v1116
    %1602 = vmatpush2.bf16.msra.mxu0 %v1115
    %1603 = vmatprep.subr.bf16.mxu0 %v1112
    %1604 = vmatpush2.bf16.msra.mxu0 %v1111
    %1605 = vmatprep.subr.bf16.mxu0 %v1108
    %1606 = vmatpush2.bf16.msra.mxu0 %v1107
    %1607 = vmatprep.subr.bf16.mxu0 %v1104
    %1608 = vmatpush2.bf16.msra.mxu0 %v1103
    %1609 = vmatprep.subr.bf16.mxu0 %v1100
    %1610 = vmatpush2.bf16.msra.mxu0 %v1099
    %1611 = vmatprep.subr.bf16.mxu0 %v1096
    %1612 = vmatpush2.bf16.msra.mxu0 %v1095
    %1613 = vmatprep.subr.bf16.mxu0 %v1092
    %1614 = vmatpush2.bf16.msra.mxu0 %v1091
    %1615 = vmatprep.mubr.bf16.mxu0 %v333
    %1616 = vmatmul.mubr.bf16.gmra.mxu0 %v332
    %v1617 = vpop.f32.mrf.mxu0
    %v1618 = vadd.f32 %v1575, %v1617
    %v1619 = vpop.f32.mrf.mxu0
    %v1620 = vadd.f32 %v1577, %v1619
    %v1621 = vpop.f32.mrf.mxu0
    %v1622 = vadd.f32 %v1579, %v1621
    %v1623 = vpop.f32.mrf.mxu0
    %v1624 = vadd.f32 %v1581, %v1623
    %1625 = vdwg.mxu0
    %1626 = vmatprep.subr.bf16.mxu0 0
    %1627 = vmatpush1.bf16.msra.mxu0 0
    %1628 = vmatprep.subr.bf16.mxu0 0
    %1629 = vmatpush1.bf16.msra.mxu0 0
    %1630 = vmatprep.subr.bf16.mxu0 0
    %1631 = vmatpush1.bf16.msra.mxu0 0
    %1632 = vmatprep.subr.bf16.mxu0 0
    %1633 = vmatpush1.bf16.msra.mxu0 0
    %1634 = vmatprep.subr.bf16.mxu0 0
    %1635 = vmatpush1.bf16.msra.mxu0 0
    %1636 = vmatprep.subr.bf16.mxu0 0
    %1637 = vmatpush1.bf16.msra.mxu0 0
    %1638 = vmatprep.subr.bf16.mxu0 0
    %1639 = vmatpush1.bf16.msra.mxu0 0
    %1640 = vmatprep.subr.bf16.mxu0 %v1124
    %1641 = vmatpush1.bf16.msra.mxu0 %v1123
    %1642 = vmatprep.subr.bf16.mxu0 0
    %1643 = vmatpush2.bf16.msra.mxu0 0
    %1644 = vmatprep.subr.bf16.mxu0 0
    %1645 = vmatpush2.bf16.msra.mxu0 0
    %1646 = vmatprep.subr.bf16.mxu0 0
    %1647 = vmatpush2.bf16.msra.mxu0 0
    %1648 = vmatprep.subr.bf16.mxu0 0
    %1649 = vmatpush2.bf16.msra.mxu0 0
    %1650 = vmatprep.subr.bf16.mxu0 0
    %1651 = vmatpush2.bf16.msra.mxu0 0
    %1652 = vmatprep.subr.bf16.mxu0 0
    %1653 = vmatpush2.bf16.msra.mxu0 0
    %1654 = vmatprep.subr.bf16.mxu0 0
    %1655 = vmatpush2.bf16.msra.mxu0 0
    %1656 = vmatprep.subr.bf16.mxu0 0
    %1657 = vmatpush2.bf16.msra.mxu0 0
    %1658 = vmatprep.mubr.bf16.mxu0 0
    %1659 = vmatmul.mubr.bf16.gmra.mxu0 %v1323
    %v1660 = vpop.f32.mrf.mxu0
    %v1661 = vadd.f32 %v1618, %v1660
    %v1662 = vpop.f32.mrf.mxu0
    %v1663 = vadd.f32 %v1620, %v1662
    %v1664 = vpop.f32.mrf.mxu0
    %v1665 = vadd.f32 %v1622, %v1664
    %v1666 = vpop.f32.mrf.mxu0
    %v1667 = vadd.f32 %v1624, %v1666
    %1668 = vdwg.mxu0
    %v1669 = vmax.f32 %v1489, 0.0
    %v1670 = vmax.f32 %v1491, 0.0
    %v1671 = vmax.f32 %v1661, 0.0
    %v1672 = vmax.f32 %v1663, 0.0
    %v1673 = vmax.f32 %v1493, 0.0
    %v1674 = vmax.f32 %v1495, 0.0
    %v1675 = vmax.f32 %v1665, 0.0
    %v1676 = vmax.f32 %v1667, 0.0
    %v1677 = vpack.c.bf16 %v1673, %v1669
    %v1678 = vpack.c.bf16 %v1674, %v1670
    %v1679 = vpack.c.bf16 %v1675, %v1671
    %v1680 = vpack.c.bf16 %v1676, %v1672
    %v1681 = vld [vmem:[%s3] sm:$0xff]
    %v1682 = vld [vmem:[%s3 + $0x8] sm:$0xff]
    %v1683 = vld [vmem:[%s3 + $0x10] sm:$0xff]
    %v1684 = vld [vmem:[%s3 + $0x18] sm:$0xff]
    %v1685 = vld [vmem:[%s3 + $0x20] sm:$0xff]
    %v1686 = vld [vmem:[%s3 + $0x28] sm:$0xff]
    %v1687 = vld [vmem:[%s3 + $0x30] sm:$0xff]
    %v1688 = vld [vmem:[%s3 + $0x38] sm:$0xff]
    %v1689 = vld [vmem:[%s3 + $0x40] sm:$0xff]
    %v1690 = vld [vmem:[%s3 + $0x48] sm:$0xff]
    %v1691 = vld [vmem:[%s3 + $0x50] sm:$0xff]
    %v1692 = vld [vmem:[%s3 + $0x58] sm:$0xff]
    %v1693 = vld [vmem:[%s3 + $0x60] sm:$0xff]
    %v1694 = vld [vmem:[%s3 + $0x68] sm:$0xff]
    %v1695 = vld [vmem:[%s3 + $0x70] sm:$0xff]
    %v1696 = vld [vmem:[%s3 + $0x78] sm:$0xff]
    %v1697 = vld [vmem:[%s3 + $0x80] sm:$0xff]
    %v1698 = vld [vmem:[%s3 + $0x88] sm:$0xff]
    %v1699 = vld [vmem:[%s3 + $0x90] sm:$0xff]
    %v1700 = vld [vmem:[%s3 + $0x98] sm:$0xff]
    %v1701 = vld [vmem:[%s3 + $0xa0] sm:$0xff]
    %v1702 = vld [vmem:[%s3 + $0xa8] sm:$0xff]
    %v1703 = vld [vmem:[%s3 + $0xb0] sm:$0xff]
    %v1704 = vld [vmem:[%s3 + $0xb8] sm:$0xff]
    %v1705 = vld [vmem:[%s3 + $0xc0] sm:$0xff]
    %v1706 = vld [vmem:[%s3 + $0xc8] sm:$0xff]
    %v1707 = vld [vmem:[%s3 + $0xd0] sm:$0xff]
    %v1708 = vld [vmem:[%s3 + $0xd8] sm:$0xff]
    %v1709 = vld [vmem:[%s3 + $0xe0] sm:$0xff]
    %v1710 = vld [vmem:[%s3 + $0xe8] sm:$0xff]
    %v1711 = vld [vmem:[%s3 + $0xf0] sm:$0xff]
    %v1712 = vld [vmem:[%s3 + $0xf8] sm:$0xff]
    %v1713 = vld [vmem:[%s3 + $0x100] sm:$0xff]
    %v1714 = vld [vmem:[%s3 + $0x108] sm:$0xff]
    %v1715 = vld [vmem:[%s3 + $0x110] sm:$0xff]
    %v1716 = vld [vmem:[%s3 + $0x118] sm:$0xff]
    %v1717 = vld [vmem:[%s3 + $0x120] sm:$0xff]
    %v1718 = vld [vmem:[%s3 + $0x128] sm:$0xff]
    %v1719 = vld [vmem:[%s3 + $0x130] sm:$0xff]
    %v1720 = vld [vmem:[%s3 + $0x138] sm:$0xff]
    %v1721 = vld [vmem:[%s3 + $0x140] sm:$0xff]
    %v1722 = vld [vmem:[%s3 + $0x148] sm:$0xff]
    %v1723 = vld [vmem:[%s3 + $0x150] sm:$0xff]
    %v1724 = vld [vmem:[%s3 + $0x158] sm:$0xff]
    %v1725 = vld [vmem:[%s3 + $0x160] sm:$0xff]
    %v1726 = vld [vmem:[%s3 + $0x168] sm:$0xff]
    %v1727 = vld [vmem:[%s3 + $0x170] sm:$0xff]
    %v1728 = vld [vmem:[%s3 + $0x178] sm:$0xff]
    %v1729 = vld [vmem:[%s3 + $0x180] sm:$0xff]
    %v1730 = vld [vmem:[%s3 + $0x188] sm:$0xff]
    %v1731 = vld [vmem:[%s3 + $0x190] sm:$0xff]
    %v1732 = vld [vmem:[%s3 + $0x198] sm:$0xff]
    %v1733 = vld [vmem:[%s3 + $0x1a0] sm:$0xff]
    %v1734 = vld [vmem:[%s3 + $0x1a8] sm:$0xff]
    %v1735 = vld [vmem:[%s3 + $0x1b0] sm:$0xff]
    %v1736 = vld [vmem:[%s3 + $0x1b8] sm:$0xff]
    %v1737 = vld [vmem:[%s3 + $0x1c0] sm:$0xff]
    %v1738 = vld [vmem:[%s3 + $0x1c8] sm:$0xff]
    %v1739 = vld [vmem:[%s3 + $0x1d0] sm:$0xff]
    %v1740 = vld [vmem:[%s3 + $0x1d8] sm:$0xff]
    %v1741 = vld [vmem:[%s3 + $0x1e0] sm:$0xff]
    %v1742 = vld [vmem:[%s3 + $0x1e8] sm:$0xff]
    %v1743 = vld [vmem:[%s3 + $0x1f0] sm:$0xff]
    %v1744 = vld [vmem:[%s3 + $0x1f8] sm:$0xff]
    %v1745 = vld [vmem:[%s4] sm:$0x3]
    %v1747 = vlaneseq
    %v1748 = vshrl.u32 %v1747, 7
    %v1749 = vsub.s32 0, %v1748
    %v1750 = vrot.slane %v1745, %v1749
    %v1751 = vlaneseq
    %v1752 = vshrl.u32 %v1751, 7
    %v1753 = vsub.s32 1, %v1752
    %v1754 = vrot.slane %v1745, %v1753
    %v1821 = vunpack.c.l.b16 %v1681
    %v1822 = vunpack.c.h.b16 %v1681
    %v1823 = vunpack.c.l.b16 %v1682
    %v1824 = vunpack.c.h.b16 %v1682
    %v1825 = vunpack.c.l.b16 %v1683
    %v1826 = vunpack.c.h.b16 %v1683
    %v1827 = vunpack.c.l.b16 %v1684
    %v1828 = vunpack.c.h.b16 %v1684
    %v1829 = vunpack.c.l.b16 %v1685
    %v1830 = vunpack.c.h.b16 %v1685
    %v1831 = vunpack.c.l.b16 %v1686
    %v1832 = vunpack.c.h.b16 %v1686
    %v1833 = vunpack.c.l.b16 %v1687
    %v1834 = vunpack.c.h.b16 %v1687
    %v1835 = vunpack.c.l.b16 %v1688
    %v1836 = vunpack.c.h.b16 %v1688
    %v1837 = vunpack.c.l.b16 %v1689
    %v1838 = vunpack.c.h.b16 %v1689
    %v1839 = vunpack.c.l.b16 %v1690
    %v1840 = vunpack.c.h.b16 %v1690
    %v1841 = vunpack.c.l.b16 %v1691
    %v1842 = vunpack.c.h.b16 %v1691
    %v1843 = vunpack.c.l.b16 %v1692
    %v1844 = vunpack.c.h.b16 %v1692
    %v1845 = vunpack.c.l.b16 %v1693
    %v1846 = vunpack.c.h.b16 %v1693
    %v1847 = vunpack.c.l.b16 %v1694
    %v1848 = vunpack.c.h.b16 %v1694
    %v1849 = vunpack.c.l.b16 %v1695
    %v1850 = vunpack.c.h.b16 %v1695
    %v1851 = vunpack.c.l.b16 %v1696
    %v1852 = vunpack.c.h.b16 %v1696
    %v1853 = vunpack.c.l.b16 %v1697
    %v1854 = vunpack.c.h.b16 %v1697
    %v1855 = vunpack.c.l.b16 %v1698
    %v1856 = vunpack.c.h.b16 %v1698
    %v1857 = vunpack.c.l.b16 %v1699
    %v1858 = vunpack.c.h.b16 %v1699
    %v1859 = vunpack.c.l.b16 %v1700
    %v1860 = vunpack.c.h.b16 %v1700
    %v1861 = vunpack.c.l.b16 %v1701
    %v1862 = vunpack.c.h.b16 %v1701
    %v1863 = vunpack.c.l.b16 %v1702
    %v1864 = vunpack.c.h.b16 %v1702
    %v1865 = vunpack.c.l.b16 %v1703
    %v1866 = vunpack.c.h.b16 %v1703
    %v1867 = vunpack.c.l.b16 %v1704
    %v1868 = vunpack.c.h.b16 %v1704
    %v1869 = vunpack.c.l.b16 %v1705
    %v1870 = vunpack.c.h.b16 %v1705
    %v1871 = vunpack.c.l.b16 %v1706
    %v1872 = vunpack.c.h.b16 %v1706
    %v1873 = vunpack.c.l.b16 %v1707
    %v1874 = vunpack.c.h.b16 %v1707
    %v1875 = vunpack.c.l.b16 %v1708
    %v1876 = vunpack.c.h.b16 %v1708
    %v1877 = vunpack.c.l.b16 %v1709
    %v1878 = vunpack.c.h.b16 %v1709
    %v1879 = vunpack.c.l.b16 %v1710
    %v1880 = vunpack.c.h.b16 %v1710
    %v1881 = vunpack.c.l.b16 %v1711
    %v1882 = vunpack.c.h.b16 %v1711
    %v1883 = vunpack.c.l.b16 %v1712
    %v1884 = vunpack.c.h.b16 %v1712
    %v1885 = vunpack.c.l.b16 %v1713
    %v1886 = vunpack.c.h.b16 %v1713
    %v1887 = vunpack.c.l.b16 %v1714
    %v1888 = vunpack.c.h.b16 %v1714
    %v1889 = vunpack.c.l.b16 %v1715
    %v1890 = vunpack.c.h.b16 %v1715
    %v1891 = vunpack.c.l.b16 %v1716
    %v1892 = vunpack.c.h.b16 %v1716
    %v1893 = vunpack.c.l.b16 %v1717
    %v1894 = vunpack.c.h.b16 %v1717
    %v1895 = vunpack.c.l.b16 %v1718
    %v1896 = vunpack.c.h.b16 %v1718
    %v1897 = vunpack.c.l.b16 %v1719
    %v1898 = vunpack.c.h.b16 %v1719
    %v1899 = vunpack.c.l.b16 %v1720
    %v1900 = vunpack.c.h.b16 %v1720
    %v1901 = vunpack.c.l.b16 %v1721
    %v1902 = vunpack.c.h.b16 %v1721
    %v1903 = vunpack.c.l.b16 %v1722
    %v1904 = vunpack.c.h.b16 %v1722
    %v1905 = vunpack.c.l.b16 %v1723
    %v1906 = vunpack.c.h.b16 %v1723
    %v1907 = vunpack.c.l.b16 %v1724
    %v1908 = vunpack.c.h.b16 %v1724
    %v1909 = vunpack.c.l.b16 %v1725
    %v1910 = vunpack.c.h.b16 %v1725
    %v1911 = vunpack.c.l.b16 %v1726
    %v1912 = vunpack.c.h.b16 %v1726
    %v1913 = vunpack.c.l.b16 %v1727
    %v1914 = vunpack.c.h.b16 %v1727
    %v1915 = vunpack.c.l.b16 %v1728
    %v1916 = vunpack.c.h.b16 %v1728
    %v1917 = vunpack.c.l.b16 %v1729
    %v1918 = vunpack.c.h.b16 %v1729
    %v1919 = vunpack.c.l.b16 %v1730
    %v1920 = vunpack.c.h.b16 %v1730
    %v1921 = vunpack.c.l.b16 %v1731
    %v1922 = vunpack.c.h.b16 %v1731
    %v1923 = vunpack.c.l.b16 %v1732
    %v1924 = vunpack.c.h.b16 %v1732
    %v1925 = vunpack.c.l.b16 %v1733
    %v1926 = vunpack.c.h.b16 %v1733
    %v1927 = vunpack.c.l.b16 %v1734
    %v1928 = vunpack.c.h.b16 %v1734
    %v1929 = vunpack.c.l.b16 %v1735
    %v1930 = vunpack.c.h.b16 %v1735
    %v1931 = vunpack.c.l.b16 %v1736
    %v1932 = vunpack.c.h.b16 %v1736
    %v1933 = vunpack.c.l.b16 %v1737
    %v1934 = vunpack.c.h.b16 %v1737
    %v1935 = vunpack.c.l.b16 %v1738
    %v1936 = vunpack.c.h.b16 %v1738
    %v1937 = vunpack.c.l.b16 %v1739
    %v1938 = vunpack.c.h.b16 %v1739
    %v1939 = vunpack.c.l.b16 %v1740
    %v1940 = vunpack.c.h.b16 %v1740
    %v1941 = vunpack.c.l.b16 %v1741
    %v1942 = vunpack.c.h.b16 %v1741
    %v1943 = vunpack.c.l.b16 %v1742
    %v1944 = vunpack.c.h.b16 %v1742
    %v1945 = vunpack.c.l.b16 %v1743
    %v1946 = vunpack.c.h.b16 %v1743
    %v1947 = vunpack.c.l.b16 %v1744
    %v1948 = vunpack.c.h.b16 %v1744
    %v1949 = vpack.c.b16 %v1823, %v1821
    %v1950 = vpack.c.b16 %v1824, %v1822
    %v1951 = vpack.c.b16 %v1827, %v1825
    %v1952 = vpack.c.b16 %v1828, %v1826
    %v1953 = vpack.c.b16 %v1831, %v1829
    %v1954 = vpack.c.b16 %v1832, %v1830
    %v1955 = vpack.c.b16 %v1835, %v1833
    %v1956 = vpack.c.b16 %v1836, %v1834
    %v1957 = vpack.c.b16 %v1839, %v1837
    %v1958 = vpack.c.b16 %v1840, %v1838
    %v1959 = vpack.c.b16 %v1843, %v1841
    %v1960 = vpack.c.b16 %v1844, %v1842
    %v1961 = vpack.c.b16 %v1847, %v1845
    %v1962 = vpack.c.b16 %v1848, %v1846
    %v1963 = vpack.c.b16 %v1851, %v1849
    %v1964 = vpack.c.b16 %v1852, %v1850
    %v1965 = vpack.c.b16 %v1855, %v1853
    %v1966 = vpack.c.b16 %v1856, %v1854
    %v1967 = vpack.c.b16 %v1859, %v1857
    %v1968 = vpack.c.b16 %v1860, %v1858
    %v1969 = vpack.c.b16 %v1863, %v1861
    %v1970 = vpack.c.b16 %v1864, %v1862
    %v1971 = vpack.c.b16 %v1867, %v1865
    %v1972 = vpack.c.b16 %v1868, %v1866
    %v1973 = vpack.c.b16 %v1871, %v1869
    %v1974 = vpack.c.b16 %v1872, %v1870
    %v1975 = vpack.c.b16 %v1875, %v1873
    %v1976 = vpack.c.b16 %v1876, %v1874
    %v1977 = vpack.c.b16 %v1879, %v1877
    %v1978 = vpack.c.b16 %v1880, %v1878
    %v1979 = vpack.c.b16 %v1883, %v1881
    %v1980 = vpack.c.b16 %v1884, %v1882
    %v1981 = vpack.c.b16 %v1887, %v1885
    %v1982 = vpack.c.b16 %v1888, %v1886
    %v1983 = vpack.c.b16 %v1891, %v1889
    %v1984 = vpack.c.b16 %v1892, %v1890
    %v1985 = vpack.c.b16 %v1895, %v1893
    %v1986 = vpack.c.b16 %v1896, %v1894
    %v1987 = vpack.c.b16 %v1899, %v1897
    %v1988 = vpack.c.b16 %v1900, %v1898
    %v1989 = vpack.c.b16 %v1903, %v1901
    %v1990 = vpack.c.b16 %v1904, %v1902
    %v1991 = vpack.c.b16 %v1907, %v1905
    %v1992 = vpack.c.b16 %v1908, %v1906
    %v1993 = vpack.c.b16 %v1911, %v1909
    %v1994 = vpack.c.b16 %v1912, %v1910
    %v1995 = vpack.c.b16 %v1915, %v1913
    %v1996 = vpack.c.b16 %v1916, %v1914
    %v1997 = vpack.c.b16 %v1919, %v1917
    %v1998 = vpack.c.b16 %v1920, %v1918
    %v1999 = vpack.c.b16 %v1923, %v1921
    %v2000 = vpack.c.b16 %v1924, %v1922
    %v2001 = vpack.c.b16 %v1927, %v1925
    %v2002 = vpack.c.b16 %v1928, %v1926
    %v2003 = vpack.c.b16 %v1931, %v1929
    %v2004 = vpack.c.b16 %v1932, %v1930
    %v2005 = vpack.c.b16 %v1935, %v1933
    %v2006 = vpack.c.b16 %v1936, %v1934
    %v2007 = vpack.c.b16 %v1939, %v1937
    %v2008 = vpack.c.b16 %v1940, %v1938
    %v2009 = vpack.c.b16 %v1943, %v1941
    %v2010 = vpack.c.b16 %v1944, %v1942
    %v2011 = vpack.c.b16 %v1947, %v1945
    %v2012 = vpack.c.b16 %v1948, %v1946
    %2077 = vmatprep.subr.bf16.mxu0 %v1964
    %2078 = vmatpush1.bf16.msra.mxu0 %v1963
    %2079 = vmatprep.subr.bf16.mxu0 %v1962
    %2080 = vmatpush1.bf16.msra.mxu0 %v1961
    %2081 = vmatprep.subr.bf16.mxu0 %v1960
    %2082 = vmatpush1.bf16.msra.mxu0 %v1959
    %2083 = vmatprep.subr.bf16.mxu0 %v1958
    %2084 = vmatpush1.bf16.msra.mxu0 %v1957
    %2085 = vmatprep.subr.bf16.mxu0 %v1956
    %2086 = vmatpush1.bf16.msra.mxu0 %v1955
    %2087 = vmatprep.subr.bf16.mxu0 %v1954
    %2088 = vmatpush1.bf16.msra.mxu0 %v1953
    %2089 = vmatprep.subr.bf16.mxu0 %v1952
    %2090 = vmatpush1.bf16.msra.mxu0 %v1951
    %2091 = vmatprep.subr.bf16.mxu0 %v1950
    %2092 = vmatpush1.bf16.msra.mxu0 %v1949
    %2093 = vmatprep.subr.bf16.mxu0 %v1980
    %2094 = vmatpush2.bf16.msra.mxu0 %v1979
    %2095 = vmatprep.subr.bf16.mxu0 %v1978
    %2096 = vmatpush2.bf16.msra.mxu0 %v1977
    %2097 = vmatprep.subr.bf16.mxu0 %v1976
    %2098 = vmatpush2.bf16.msra.mxu0 %v1975
    %2099 = vmatprep.subr.bf16.mxu0 %v1974
    %2100 = vmatpush2.bf16.msra.mxu0 %v1973
    %2101 = vmatprep.subr.bf16.mxu0 %v1972
    %2102 = vmatpush2.bf16.msra.mxu0 %v1971
    %2103 = vmatprep.subr.bf16.mxu0 %v1970
    %2104 = vmatpush2.bf16.msra.mxu0 %v1969
    %2105 = vmatprep.subr.bf16.mxu0 %v1968
    %2106 = vmatpush2.bf16.msra.mxu0 %v1967
    %2107 = vmatprep.subr.bf16.mxu0 %v1966
    %2108 = vmatpush2.bf16.msra.mxu0 %v1965
    %2109 = vmatprep.mubr.bf16.mxu0 %v1678
    %2110 = vmatmul.mubr.bf16.gmra.mxu0 %v1677
    %v2111 = vpop.f32.mrf.mxu0
    %v2112 = vadd.f32 %v1750, %v2111
    %v2113 = vpop.f32.mrf.mxu0
    %v2114 = vadd.f32 %v1754, %v2113
    %v2115 = vpop.f32.mrf.mxu0
    %v2116 = vadd.f32 %v1750, %v2115
    %v2117 = vpop.f32.mrf.mxu0
    %v2118 = vadd.f32 %v1754, %v2117
    %2119 = vdwg.mxu0
    %2120 = vmatprep.subr.bf16.mxu0 %v1996
    %2121 = vmatpush1.bf16.msra.mxu0 %v1995
    %2122 = vmatprep.subr.bf16.mxu0 %v1994
    %2123 = vmatpush1.bf16.msra.mxu0 %v1993
    %2124 = vmatprep.subr.bf16.mxu0 %v1992
    %2125 = vmatpush1.bf16.msra.mxu0 %v1991
    %2126 = vmatprep.subr.bf16.mxu0 %v1990
    %2127 = vmatpush1.bf16.msra.mxu0 %v1989
    %2128 = vmatprep.subr.bf16.mxu0 %v1988
    %2129 = vmatpush1.bf16.msra.mxu0 %v1987
    %2130 = vmatprep.subr.bf16.mxu0 %v1986
    %2131 = vmatpush1.bf16.msra.mxu0 %v1985
    %2132 = vmatprep.subr.bf16.mxu0 %v1984
    %2133 = vmatpush1.bf16.msra.mxu0 %v1983
    %2134 = vmatprep.subr.bf16.mxu0 %v1982
    %2135 = vmatpush1.bf16.msra.mxu0 %v1981
    %2136 = vmatprep.subr.bf16.mxu0 %v2012
    %2137 = vmatpush2.bf16.msra.mxu0 %v2011
    %2138 = vmatprep.subr.bf16.mxu0 %v2010
    %2139 = vmatpush2.bf16.msra.mxu0 %v2009
    %2140 = vmatprep.subr.bf16.mxu0 %v2008
    %2141 = vmatpush2.bf16.msra.mxu0 %v2007
    %2142 = vmatprep.subr.bf16.mxu0 %v2006
    %2143 = vmatpush2.bf16.msra.mxu0 %v2005
    %2144 = vmatprep.subr.bf16.mxu0 %v2004
    %2145 = vmatpush2.bf16.msra.mxu0 %v2003
    %2146 = vmatprep.subr.bf16.mxu0 %v2002
    %2147 = vmatpush2.bf16.msra.mxu0 %v2001
    %2148 = vmatprep.subr.bf16.mxu0 %v2000
    %2149 = vmatpush2.bf16.msra.mxu0 %v1999
    %2150 = vmatprep.subr.bf16.mxu0 %v1998
    %2151 = vmatpush2.bf16.msra.mxu0 %v1997
    %2152 = vmatprep.mubr.bf16.mxu0 %v1680
    %2153 = vmatmul.mubr.bf16.gmra.mxu0 %v1679
    %v2154 = vpop.f32.mrf.mxu0
    %v2155 = vadd.f32 %v2112, %v2154
    %v2156 = vpop.f32.mrf.mxu0
    %v2157 = vadd.f32 %v2114, %v2156
    %v2158 = vpop.f32.mrf.mxu0
    %v2159 = vadd.f32 %v2116, %v2158
    %v2160 = vpop.f32.mrf.mxu0
    %v2161 = vadd.f32 %v2118, %v2160
    %2162 = vdwg.mxu0
    %v2163 = vmax.f32 %v2155, 0.0
    %v2164 = vmax.f32 %v2157, 0.0
    %v2165 = vmax.f32 %v2159, 0.0
    %v2166 = vmax.f32 %v2161, 0.0
    %v2167 = vpack.c.bf16 %v2165, %v2163
    %v2168 = vpack.c.bf16 %v2166, %v2164
    %v2169 = vld [vmem:[#allocation4] sm:$0xff]
    %v2170 = vld [vmem:[#allocation4 + $0x8] sm:$0xff]
    %v2171 = vld [vmem:[#allocation4 + $0x10] sm:$0xff]
    %v2172 = vld [vmem:[#allocation4 + $0x18] sm:$0xff]
    %v2173 = vld [vmem:[#allocation4 + $0x20] sm:$0xff]
    %v2174 = vld [vmem:[#allocation4 + $0x28] sm:$0xff]
    %v2175 = vld [vmem:[#allocation4 + $0x30] sm:$0xff]
    %v2176 = vld [vmem:[#allocation4 + $0x38] sm:$0xff]
    %v2177 = vld [vmem:[#allocation4 + $0x40] sm:$0xff]
    %v2178 = vld [vmem:[#allocation4 + $0x48] sm:$0xff]
    %v2179 = vld [vmem:[#allocation4 + $0x50] sm:$0xff]
    %v2180 = vld [vmem:[#allocation4 + $0x58] sm:$0xff]
    %v2181 = vld [vmem:[#allocation4 + $0x60] sm:$0xff]
    %v2182 = vld [vmem:[#allocation4 + $0x68] sm:$0xff]
    %v2183 = vld [vmem:[#allocation4 + $0x70] sm:$0xff]
    %v2184 = vld [vmem:[#allocation4 + $0x78] sm:$0xff]
    %v2185 = vld [vmem:[#allocation4 + $0x80] sm:$0xff]
    %v2186 = vld [vmem:[#allocation4 + $0x88] sm:$0xff]
    %v2187 = vld [vmem:[#allocation4 + $0x90] sm:$0xff]
    %v2188 = vld [vmem:[#allocation4 + $0x98] sm:$0xff]
    %v2189 = vld [vmem:[#allocation4 + $0xa0] sm:$0xff]
    %v2190 = vld [vmem:[#allocation4 + $0xa8] sm:$0xff]
    %v2191 = vld [vmem:[#allocation4 + $0xb0] sm:$0xff]
    %v2192 = vld [vmem:[#allocation4 + $0xb8] sm:$0xff]
    %v2193 = vld [vmem:[#allocation4 + $0xc0] sm:$0xff]
    %v2194 = vld [vmem:[#allocation4 + $0xc8] sm:$0xff]
    %v2195 = vld [vmem:[#allocation4 + $0xd0] sm:$0xff]
    %v2196 = vld [vmem:[#allocation4 + $0xd8] sm:$0xff]
    %v2197 = vld [vmem:[#allocation4 + $0xe0] sm:$0xff]
    %v2198 = vld [vmem:[#allocation4 + $0xe8] sm:$0xff]
    %v2199 = vld [vmem:[#allocation4 + $0xf0] sm:$0xff]
    %v2200 = vld [vmem:[#allocation4 + $0xf8] sm:$0xff]
    %v2201 = vld [vmem:[%s6] sm:$0x3]
    %v2203 = vlaneseq
    %v2204 = vshrl.u32 %v2203, 7
    %v2205 = vsub.s32 0, %v2204
    %v2206 = vrot.slane %v2201, %v2205
    %v2207 = vlaneseq
    %v2208 = vshrl.u32 %v2207, 7
    %v2209 = vsub.s32 1, %v2208
    %v2210 = vrot.slane %v2201, %v2209
    %v2245 = vunpack.c.l.b16 %v2169
    %v2246 = vunpack.c.h.b16 %v2169
    %v2247 = vunpack.c.l.b16 %v2170
    %v2248 = vunpack.c.h.b16 %v2170
    %v2249 = vunpack.c.l.b16 %v2171
    %v2250 = vunpack.c.h.b16 %v2171
    %v2251 = vunpack.c.l.b16 %v2172
    %v2252 = vunpack.c.h.b16 %v2172
    %v2253 = vunpack.c.l.b16 %v2173
    %v2254 = vunpack.c.h.b16 %v2173
    %v2255 = vunpack.c.l.b16 %v2174
    %v2256 = vunpack.c.h.b16 %v2174
    %v2257 = vunpack.c.l.b16 %v2175
    %v2258 = vunpack.c.h.b16 %v2175
    %v2259 = vunpack.c.l.b16 %v2176
    %v2260 = vunpack.c.h.b16 %v2176
    %v2261 = vunpack.c.l.b16 %v2177
    %v2262 = vunpack.c.h.b16 %v2177
    %v2263 = vunpack.c.l.b16 %v2178
    %v2264 = vunpack.c.h.b16 %v2178
    %v2265 = vunpack.c.l.b16 %v2179
    %v2266 = vunpack.c.h.b16 %v2179
    %v2267 = vunpack.c.l.b16 %v2180
    %v2268 = vunpack.c.h.b16 %v2180
    %v2269 = vunpack.c.l.b16 %v2181
    %v2270 = vunpack.c.h.b16 %v2181
    %v2271 = vunpack.c.l.b16 %v2182
    %v2272 = vunpack.c.h.b16 %v2182
    %v2273 = vunpack.c.l.b16 %v2183
    %v2274 = vunpack.c.h.b16 %v2183
    %v2275 = vunpack.c.l.b16 %v2184
    %v2276 = vunpack.c.h.b16 %v2184
    %v2277 = vunpack.c.l.b16 %v2185
    %v2278 = vunpack.c.h.b16 %v2185
    %v2279 = vunpack.c.l.b16 %v2186
    %v2280 = vunpack.c.h.b16 %v2186
    %v2281 = vunpack.c.l.b16 %v2187
    %v2282 = vunpack.c.h.b16 %v2187
    %v2283 = vunpack.c.l.b16 %v2188
    %v2284 = vunpack.c.h.b16 %v2188
    %v2285 = vunpack.c.l.b16 %v2189
    %v2286 = vunpack.c.h.b16 %v2189
    %v2287 = vunpack.c.l.b16 %v2190
    %v2288 = vunpack.c.h.b16 %v2190
    %v2289 = vunpack.c.l.b16 %v2191
    %v2290 = vunpack.c.h.b16 %v2191
    %v2291 = vunpack.c.l.b16 %v2192
    %v2292 = vunpack.c.h.b16 %v2192
    %v2293 = vunpack.c.l.b16 %v2193
    %v2294 = vunpack.c.h.b16 %v2193
    %v2295 = vunpack.c.l.b16 %v2194
    %v2296 = vunpack.c.h.b16 %v2194
    %v2297 = vunpack.c.l.b16 %v2195
    %v2298 = vunpack.c.h.b16 %v2195
    %v2299 = vunpack.c.l.b16 %v2196
    %v2300 = vunpack.c.h.b16 %v2196
    %v2301 = vunpack.c.l.b16 %v2197
    %v2302 = vunpack.c.h.b16 %v2197
    %v2303 = vunpack.c.l.b16 %v2198
    %v2304 = vunpack.c.h.b16 %v2198
    %v2305 = vunpack.c.l.b16 %v2199
    %v2306 = vunpack.c.h.b16 %v2199
    %v2307 = vunpack.c.l.b16 %v2200
    %v2308 = vunpack.c.h.b16 %v2200
    %v2309 = vpack.c.b16 %v2247, %v2245
    %v2310 = vpack.c.b16 %v2248, %v2246
    %v2311 = vpack.c.b16 %v2251, %v2249
    %v2312 = vpack.c.b16 %v2252, %v2250
    %v2313 = vpack.c.b16 %v2255, %v2253
    %v2314 = vpack.c.b16 %v2256, %v2254
    %v2315 = vpack.c.b16 %v2259, %v2257
    %v2316 = vpack.c.b16 %v2260, %v2258
    %v2317 = vpack.c.b16 %v2263, %v2261
    %v2318 = vpack.c.b16 %v2264, %v2262
    %v2319 = vpack.c.b16 %v2267, %v2265
    %v2320 = vpack.c.b16 %v2268, %v2266
    %v2321 = vpack.c.b16 %v2271, %v2269
    %v2322 = vpack.c.b16 %v2272, %v2270
    %v2323 = vpack.c.b16 %v2275, %v2273
    %v2324 = vpack.c.b16 %v2276, %v2274
    %v2325 = vpack.c.b16 %v2279, %v2277
    %v2326 = vpack.c.b16 %v2280, %v2278
    %v2327 = vpack.c.b16 %v2283, %v2281
    %v2328 = vpack.c.b16 %v2284, %v2282
    %v2329 = vpack.c.b16 %v2287, %v2285
    %v2330 = vpack.c.b16 %v2288, %v2286
    %v2331 = vpack.c.b16 %v2291, %v2289
    %v2332 = vpack.c.b16 %v2292, %v2290
    %v2333 = vpack.c.b16 %v2295, %v2293
    %v2334 = vpack.c.b16 %v2296, %v2294
    %v2335 = vpack.c.b16 %v2299, %v2297
    %v2336 = vpack.c.b16 %v2300, %v2298
    %v2337 = vpack.c.b16 %v2303, %v2301
    %v2338 = vpack.c.b16 %v2304, %v2302
    %v2339 = vpack.c.b16 %v2307, %v2305
    %v2340 = vpack.c.b16 %v2308, %v2306
    %2373 = vmatprep.subr.bf16.mxu0 %v2324
    %2374 = vmatpush1.bf16.msra.mxu0 %v2323
    %2375 = vmatprep.subr.bf16.mxu0 %v2322
    %2376 = vmatpush1.bf16.msra.mxu0 %v2321
    %2377 = vmatprep.subr.bf16.mxu0 %v2320
    %2378 = vmatpush1.bf16.msra.mxu0 %v2319
    %2379 = vmatprep.subr.bf16.mxu0 %v2318
    %2380 = vmatpush1.bf16.msra.mxu0 %v2317
    %2381 = vmatprep.subr.bf16.mxu0 %v2316
    %2382 = vmatpush1.bf16.msra.mxu0 %v2315
    %2383 = vmatprep.subr.bf16.mxu0 %v2314
    %2384 = vmatpush1.bf16.msra.mxu0 %v2313
    %2385 = vmatprep.subr.bf16.mxu0 %v2312
    %2386 = vmatpush1.bf16.msra.mxu0 %v2311
    %2387 = vmatprep.subr.bf16.mxu0 %v2310
    %2388 = vmatpush1.bf16.msra.mxu0 %v2309
    %2389 = vmatprep.subr.bf16.mxu0 %v2340
    %2390 = vmatpush2.bf16.msra.mxu0 %v2339
    %2391 = vmatprep.subr.bf16.mxu0 %v2338
    %2392 = vmatpush2.bf16.msra.mxu0 %v2337
    %2393 = vmatprep.subr.bf16.mxu0 %v2336
    %2394 = vmatpush2.bf16.msra.mxu0 %v2335
    %2395 = vmatprep.subr.bf16.mxu0 %v2334
    %2396 = vmatpush2.bf16.msra.mxu0 %v2333
    %2397 = vmatprep.subr.bf16.mxu0 %v2332
    %2398 = vmatpush2.bf16.msra.mxu0 %v2331
    %2399 = vmatprep.subr.bf16.mxu0 %v2330
    %2400 = vmatpush2.bf16.msra.mxu0 %v2329
    %2401 = vmatprep.subr.bf16.mxu0 %v2328
    %2402 = vmatpush2.bf16.msra.mxu0 %v2327
    %2403 = vmatprep.subr.bf16.mxu0 %v2326
    %2404 = vmatpush2.bf16.msra.mxu0 %v2325
    %2405 = vmatprep.mubr.bf16.mxu0 %v2168
    %2406 = vmatmul.mubr.bf16.gmra.mxu0 %v2167
    %v2407 = vpop.f32.mrf.mxu0
    %v2408 = vadd.f32 %v2206, %v2407
    %v2409 = vpop.f32.mrf.mxu0
    %v2410 = vadd.f32 %v2210, %v2409
    %v2411 = vpop.f32.mrf.mxu0
    %v2412 = vadd.f32 %v2206, %v2411
    %v2413 = vpop.f32.mrf.mxu0
    %v2414 = vadd.f32 %v2210, %v2413
    %2415 = vdwg.mxu0
    %v2416 = vmax.f32 %v2408, 0.0
    %v2417 = vmax.f32 %v2410, 0.0
    %v2418 = vmax.f32 %v2412, 0.0
    %v2419 = vmax.f32 %v2414, 0.0
    %v2420 = vpack.c.bf16 %v2418, %v2416
    %v2421 = vpack.c.bf16 %v2419, %v2417
    %v2422 = vld [vmem:[#allocation6] sm:$0xf]
    %v2423 = vld [vmem:[#allocation6 + $0x4] sm:$0xf]
    %v2424 = vld [vmem:[#allocation6 + $0x8] sm:$0xf]
    %v2425 = vld [vmem:[#allocation6 + $0xc] sm:$0xf]
    %v2426 = vld [vmem:[#allocation6 + $0x10] sm:$0xf]
    %v2427 = vld [vmem:[#allocation6 + $0x14] sm:$0xf]
    %v2428 = vld [vmem:[#allocation6 + $0x18] sm:$0xf]
    %v2429 = vld [vmem:[#allocation6 + $0x1c] sm:$0xf]
    %v2430 = vld [vmem:[#allocation6 + $0x20] sm:$0xf]
    %v2431 = vld [vmem:[#allocation6 + $0x24] sm:$0xf]
    %v2432 = vld [vmem:[#allocation6 + $0x28] sm:$0xf]
    %v2433 = vld [vmem:[#allocation6 + $0x2c] sm:$0xf]
    %v2434 = vld [vmem:[#allocation6 + $0x30] sm:$0xf]
    %v2435 = vld [vmem:[#allocation6 + $0x34] sm:$0xf]
    %v2436 = vld [vmem:[#allocation6 + $0x38] sm:$0xf]
    %v2437 = vld [vmem:[#allocation6 + $0x3c] sm:$0xf]
    %v2438 = vld [vmem:[#allocation6 + $0x40] sm:$0xf]
    %v2439 = vld [vmem:[#allocation6 + $0x44] sm:$0xf]
    %v2440 = vld [vmem:[#allocation6 + $0x48] sm:$0xf]
    %v2441 = vld [vmem:[#allocation6 + $0x4c] sm:$0xf]
    %v2442 = vld [vmem:[#allocation6 + $0x50] sm:$0xf]
    %v2443 = vld [vmem:[#allocation6 + $0x54] sm:$0xf]
    %v2444 = vld [vmem:[#allocation6 + $0x58] sm:$0xf]
    %v2445 = vld [vmem:[#allocation6 + $0x5c] sm:$0xf]
    %v2446 = vld [vmem:[#allocation6 + $0x60] sm:$0xf]
    %v2447 = vld [vmem:[#allocation6 + $0x64] sm:$0xf]
    %v2448 = vld [vmem:[#allocation6 + $0x68] sm:$0xf]
    %v2449 = vld [vmem:[#allocation6 + $0x6c] sm:$0xf]
    %v2450 = vld [vmem:[#allocation6 + $0x70] sm:$0xf]
    %v2451 = vld [vmem:[#allocation6 + $0x74] sm:$0xf]
    %v2452 = vld [vmem:[#allocation6 + $0x78] sm:$0xf]
    %v2453 = vld [vmem:[#allocation6 + $0x7c] sm:$0xf]
    %v2454 = vld [vmem:[%s8] sm:$0x1]
    %v2456 = vlaneseq
    %v2457 = vshrl.u32 %v2456, 7
    %v2458 = vsub.s32 0, %v2457
    %v2459 = vrot.slane %v2454, %v2458
    %v2493 = vunpack.c.l.b16 %v2422
    %v2494 = vunpack.c.l.b16 %v2423
    %v2495 = vunpack.c.l.b16 %v2424
    %v2496 = vunpack.c.l.b16 %v2425
    %v2497 = vunpack.c.l.b16 %v2426
    %v2498 = vunpack.c.l.b16 %v2427
    %v2499 = vunpack.c.l.b16 %v2428
    %v2500 = vunpack.c.l.b16 %v2429
    %v2501 = vunpack.c.l.b16 %v2430
    %v2502 = vunpack.c.l.b16 %v2431
    %v2503 = vunpack.c.l.b16 %v2432
    %v2504 = vunpack.c.l.b16 %v2433
    %v2505 = vunpack.c.l.b16 %v2434
    %v2506 = vunpack.c.l.b16 %v2435
    %v2507 = vunpack.c.l.b16 %v2436
    %v2508 = vunpack.c.l.b16 %v2437
    %v2509 = vunpack.c.l.b16 %v2438
    %v2510 = vunpack.c.l.b16 %v2439
    %v2511 = vunpack.c.l.b16 %v2440
    %v2512 = vunpack.c.l.b16 %v2441
    %v2513 = vunpack.c.l.b16 %v2442
    %v2514 = vunpack.c.l.b16 %v2443
    %v2515 = vunpack.c.l.b16 %v2444
    %v2516 = vunpack.c.l.b16 %v2445
    %v2517 = vunpack.c.l.b16 %v2446
    %v2518 = vunpack.c.l.b16 %v2447
    %v2519 = vunpack.c.l.b16 %v2448
    %v2520 = vunpack.c.l.b16 %v2449
    %v2521 = vunpack.c.l.b16 %v2450
    %v2522 = vunpack.c.l.b16 %v2451
    %v2523 = vunpack.c.l.b16 %v2452
    %v2524 = vunpack.c.l.b16 %v2453
    %v2525 = vpack.c.b16 %v2494, %v2493
    %v2526 = vpack.c.b16 %v2496, %v2495
    %v2527 = vpack.c.b16 %v2498, %v2497
    %v2528 = vpack.c.b16 %v2500, %v2499
    %v2529 = vpack.c.b16 %v2502, %v2501
    %v2530 = vpack.c.b16 %v2504, %v2503
    %v2531 = vpack.c.b16 %v2506, %v2505
    %v2532 = vpack.c.b16 %v2508, %v2507
    %v2533 = vpack.c.b16 %v2510, %v2509
    %v2534 = vpack.c.b16 %v2512, %v2511
    %v2535 = vpack.c.b16 %v2514, %v2513
    %v2536 = vpack.c.b16 %v2516, %v2515
    %v2537 = vpack.c.b16 %v2518, %v2517
    %v2538 = vpack.c.b16 %v2520, %v2519
    %v2539 = vpack.c.b16 %v2522, %v2521
    %v2540 = vpack.c.b16 %v2524, %v2523
    %2557 = vmatprep.subr.bf16.mxu0 0
    %2558 = vmatpush1.bf16.msra.mxu0 %v2532
    %2559 = vmatprep.subr.bf16.mxu0 0
    %2560 = vmatpush1.bf16.msra.mxu0 %v2531
    %2561 = vmatprep.subr.bf16.mxu0 0
    %2562 = vmatpush1.bf16.msra.mxu0 %v2530
    %2563 = vmatprep.subr.bf16.mxu0 0
    %2564 = vmatpush1.bf16.msra.mxu0 %v2529
    %2565 = vmatprep.subr.bf16.mxu0 0
    %2566 = vmatpush1.bf16.msra.mxu0 %v2528
    %2567 = vmatprep.subr.bf16.mxu0 0
    %2568 = vmatpush1.bf16.msra.mxu0 %v2527
    %2569 = vmatprep.subr.bf16.mxu0 0
    %2570 = vmatpush1.bf16.msra.mxu0 %v2526
    %2571 = vmatprep.subr.bf16.mxu0 0
    %2572 = vmatpush1.bf16.msra.mxu0 %v2525
    %2573 = vmatprep.subr.bf16.mxu0 0
    %2574 = vmatpush2.bf16.msra.mxu0 %v2540
    %2575 = vmatprep.subr.bf16.mxu0 0
    %2576 = vmatpush2.bf16.msra.mxu0 %v2539
    %2577 = vmatprep.subr.bf16.mxu0 0
    %2578 = vmatpush2.bf16.msra.mxu0 %v2538
    %2579 = vmatprep.subr.bf16.mxu0 0
    %2580 = vmatpush2.bf16.msra.mxu0 %v2537
    %2581 = vmatprep.subr.bf16.mxu0 0
    %2582 = vmatpush2.bf16.msra.mxu0 %v2536
    %2583 = vmatprep.subr.bf16.mxu0 0
    %2584 = vmatpush2.bf16.msra.mxu0 %v2535
    %2585 = vmatprep.subr.bf16.mxu0 0
    %2586 = vmatpush2.bf16.msra.mxu0 %v2534
    %2587 = vmatprep.subr.bf16.mxu0 0
    %2588 = vmatpush2.bf16.msra.mxu0 %v2533
    %2589 = vmatprep.mubr.bf16.mxu0 %v2421
    %2590 = vmatmul.mubr.bf16.gmra.mxu0 %v2420
    %v2591 = vpop.f32.mrf.mxu0
    %v2592 = vadd.f32 %v2459, %v2591
    %v2593 = vpop.f32.mrf.mxu0
    %v2594 = vpop.f32.mrf.mxu0
    %v2595 = vadd.f32 %v2459, %v2594
    %v2596 = vpop.f32.mrf.mxu0
    %2597 = vdwg.mxu0
    %v2598 = vmax.f32 %v2592, 0.0
    %v2599 = vmax.f32 %v2595, 0.0
    %v2600 = vpack.c.bf16 %v2599, %v2598
    %v2601 = vld [vmem:[%s9] sm:$0xf]
    %v2602 = vld [vmem:[%s9 + $0x4] sm:$0xf]
    %v2603 = vld [vmem:[%s9 + $0x8] sm:$0xf]
    %v2604 = vld [vmem:[%s9 + $0xc] sm:$0xf]
    %v2605 = vld [vmem:[%s9 + $0x10] sm:$0xf]
    %v2606 = vld [vmem:[%s9 + $0x14] sm:$0xf]
    %v2607 = vld [vmem:[%s9 + $0x18] sm:$0xf]
    %v2608 = vld [vmem:[%s9 + $0x1c] sm:$0xf]
    %v2609 = vld [vmem:[%s9 + $0x20] sm:$0xf]
    %v2610 = vld [vmem:[%s9 + $0x24] sm:$0xf]
    %v2611 = vld [vmem:[%s9 + $0x28] sm:$0xf]
    %v2612 = vld [vmem:[%s9 + $0x2c] sm:$0xf]
    %v2613 = vld [vmem:[%s9 + $0x30] sm:$0xf]
    %v2614 = vld [vmem:[%s9 + $0x34] sm:$0xf]
    %v2615 = vld [vmem:[%s9 + $0x38] sm:$0xf]
    %v2616 = vld [vmem:[%s9 + $0x3c] sm:$0xf]
    %v2617 = vld [vmem:[%s10] sm:$0x1]
    %v2619 = vlaneseq
    %v2620 = vshrl.u32 %v2619, 7
    %v2621 = vsub.s32 0, %v2620
    %v2622 = vrot.slane %v2617, %v2621
    %v2640 = vunpack.c.l.b16 %v2601
    %v2641 = vunpack.c.l.b16 %v2602
    %v2642 = vunpack.c.l.b16 %v2603
    %v2643 = vunpack.c.l.b16 %v2604
    %v2644 = vunpack.c.l.b16 %v2605
    %v2645 = vunpack.c.l.b16 %v2606
    %v2646 = vunpack.c.l.b16 %v2607
    %v2647 = vunpack.c.l.b16 %v2608
    %v2648 = vunpack.c.l.b16 %v2609
    %v2649 = vunpack.c.l.b16 %v2610
    %v2650 = vunpack.c.l.b16 %v2611
    %v2651 = vunpack.c.l.b16 %v2612
    %v2652 = vunpack.c.l.b16 %v2613
    %v2653 = vunpack.c.l.b16 %v2614
    %v2654 = vunpack.c.l.b16 %v2615
    %v2655 = vunpack.c.l.b16 %v2616
    %v2656 = vpack.c.b16 %v2641, %v2640
    %v2657 = vpack.c.b16 %v2643, %v2642
    %v2658 = vpack.c.b16 %v2645, %v2644
    %v2659 = vpack.c.b16 %v2647, %v2646
    %v2660 = vpack.c.b16 %v2649, %v2648
    %v2661 = vpack.c.b16 %v2651, %v2650
    %v2662 = vpack.c.b16 %v2653, %v2652
    %v2663 = vpack.c.b16 %v2655, %v2654
    %2672 = vmatprep.subr.bf16.mxu0 0
    %2673 = vmatpush1.bf16.msra.mxu0 %v2663
    %2674 = vmatprep.subr.bf16.mxu0 0
    %2675 = vmatpush1.bf16.msra.mxu0 %v2662
    %2676 = vmatprep.subr.bf16.mxu0 0
    %2677 = vmatpush1.bf16.msra.mxu0 %v2661
    %2678 = vmatprep.subr.bf16.mxu0 0
    %2679 = vmatpush1.bf16.msra.mxu0 %v2660
    %2680 = vmatprep.subr.bf16.mxu0 0
    %2681 = vmatpush1.bf16.msra.mxu0 %v2659
    %2682 = vmatprep.subr.bf16.mxu0 0
    %2683 = vmatpush1.bf16.msra.mxu0 %v2658
    %2684 = vmatprep.subr.bf16.mxu0 0
    %2685 = vmatpush1.bf16.msra.mxu0 %v2657
    %2686 = vmatprep.subr.bf16.mxu0 0
    %2687 = vmatpush1.bf16.msra.mxu0 %v2656
    %2688 = vmatprep.subr.bf16.mxu0 0
    %2689 = vmatpush2.bf16.msra.mxu0 0
    %2690 = vmatprep.subr.bf16.mxu0 0
    %2691 = vmatpush2.bf16.msra.mxu0 0
    %2692 = vmatprep.subr.bf16.mxu0 0
    %2693 = vmatpush2.bf16.msra.mxu0 0
    %2694 = vmatprep.subr.bf16.mxu0 0
    %2695 = vmatpush2.bf16.msra.mxu0 0
    %2696 = vmatprep.subr.bf16.mxu0 0
    %2697 = vmatpush2.bf16.msra.mxu0 0
    %2698 = vmatprep.subr.bf16.mxu0 0
    %2699 = vmatpush2.bf16.msra.mxu0 0
    %2700 = vmatprep.subr.bf16.mxu0 0
    %2701 = vmatpush2.bf16.msra.mxu0 0
    %2702 = vmatprep.subr.bf16.mxu0 0
    %2703 = vmatpush2.bf16.msra.mxu0 0
    %2704 = vmatprep.mubr.bf16.mxu0 0
    %2705 = vmatmul.mubr.bf16.gmra.mxu0 %v2600
    %v2706 = vpop.f32.mrf.mxu0
    %v2707 = vadd.f32 %v2622, %v2706
    %v2708 = vpop.f32.mrf.mxu0
    %v2709 = vpop.f32.mrf.mxu0
    %v2710 = vadd.f32 %v2622, %v2709
    %v2711 = vpop.f32.mrf.mxu0
    %2712 = vdwg.mxu0
    %v2713 = vlaneseq
    %v2714 = vand.u32 %v2713, 127
    %vm2715 = vcmp.lt.s32.totalorder %v2714, 10
    %v2716 = vsel %vm2715, %v2707, -inf
    %v2717 = vsel %vm2715, %v2710, -inf
    %2718 = vmax.xlane.f32.xlu0 %v2716
    %v2719 = vpop.xlane.xlu0 %2718
    %2720 = vmax.xlane.f32.xlu0 %v2717
    %v2721 = vpop.xlane.xlu0 %2720
    %v2722 = vsub.f32 %v2716, %v2719
    %v2723 = vsub.f32 %v2717, %v2721
    %v2724 = vmul.f32 %v2722, 1.442695
    %v2725 = vpow.pop %v2724
    %v2726 = vmul.f32 %v2723, 1.442695
    %v2727 = vpow.pop %v2726
    %2728 = vadd.xlane.f32.xlu0 %v2725
    %v2729 = vpop.xlane.xlu0 %2728
    %2730 = vadd.xlane.f32.xlu0 %v2727
    %v2731 = vpop.xlane.xlu0 %2730
    %v2732 = vlog2.pop %v2729
    %v2733 = vmul.f32 %v2732, 0.6931472
    %v2734 = vlog2.pop %v2731
    %v2735 = vmul.f32 %v2734, 0.6931472
    %v2736 = vsub.f32 %v2722, %v2733
    %v2737 = vsub.f32 %v2723, %v2735
    %v2738 = vsel %vm2715, %v2736, 0.0
    %v2739 = vsel %vm2715, %v2737, 0.0
    %2740 = vst [vmem:[%s11] sm:$0xff] %v2738
    %2741 = vst [vmem:[%s11 + $0x8] sm:$0xff] %v2739
    // Predicated region
    $region58: #{fcnet_forward.1} parent=1 // pred_check
      _
    $region59: #{fcnet_forward.1} parent=1 // pred_check_branch
      %2743 = sbr.rel (0) target = $region61
    $region60: #{fcnet_forward.1} parent=1 // pred_region
      _
    $region61: #{fcnet_forward.1} parent=1 // pred_fallthru
      _
    // Predicated region
    $region62: #{fcnet_forward.1} parent=1 // pred_check
      _
    $region63: #{fcnet_forward.1} parent=1 // pred_check_branch
      %2745 = sbr.rel (0) target = $region65
    $region64: #{fcnet_forward.1} parent=1 // pred_region
      _
    $region65: #{fcnet_forward.1} parent=1 // pred_fallthru
      _
    %2746 = vsyncpa [#allocation3], 1
    %2747 = vsyncpa [#allocation5], 1

</llo_original>
